<compile_context>
chip_gen: v7x
topology: tpu7x:2x2x1
jax: 0.10.0
libtpu: 0.0.40
codegen_flags: <defaults>
</compile_context>

<pallas_src>
import functools

import jax
import jax.numpy as jnp
from jax.experimental import pallas as pl
from jax.experimental.pallas import tpu as pltpu

FEAT = 128          # lane-dense padded output width of every layer
NUM_LAYERS = 4


def _round_up(n, m):
    return ((n + m - 1) // m) * m


def _net_dims(n_input, n_h1, n_h2, n_h3, n_output):
    in_dims = (n_input, n_h1, n_h2, n_h3)
    out_dims = (n_h1, n_h2, n_h3, n_output)
    # K (contraction) padding: real inputs + one constant "bias carry" lane,
    # rounded up to a sublane multiple.
    k_pad = _round_up(max(in_dims) + 1, 8)
    carry = k_pad - 1
    assert k_pad <= FEAT, "this kernel assumes input/hidden widths <= 127"
    assert max(out_dims) <= FEAT
    # Hidden-layer real outputs must not collide with the carry lane.
    assert all(o <= carry for o in out_dims[:NUM_LAYERS - 1])
    return in_dims, out_dims, k_pad, carry


def build_population_params(flat_weights, n_input, n_h1, n_h2, n_h3, n_output,
                            param_dtype=jnp.bfloat16):
    """Mirrors Genetic_Algorithm_Network.update_weights for every candidate.

    Each layer's weight is transposed to (in, out), zero-padded to
    (K_PAD, FEAT), and its bias is folded into row `carry` (the constant input
    lane).  Hidden layers also get W[carry, carry] = 1 so the constant lane
    survives ReLU into the next layer.

    Returns w_stack: (P, 4, K_PAD, FEAT) in `param_dtype`, plus (k_pad, carry).
    """
    flat = jnp.asarray(flat_weights, jnp.float32)
    if flat.ndim == 1:
        flat = flat[None, :]
    pop = flat.shape[0]
    in_dims, out_dims, k_pad, carry = _net_dims(
        n_input, n_h1, n_h2, n_h3, n_output)

    mats = []
    off = 0
    for layer, (n_in, n_out) in enumerate(zip(in_dims, out_dims)):
        w = flat[:, off:off + n_in * n_out].reshape(pop, n_out, n_in)
        off += n_in * n_out
        b = flat[:, off:off + n_out]
        off += n_out
        wp = jnp.zeros((pop, k_pad, FEAT), jnp.float32)
        wp = wp.at[:, :n_in, :n_out].set(w.transpose(0, 2, 1))   # (P, in, out)
        wp = wp.at[:, carry, :n_out].set(b)                      # folded bias
        if layer < NUM_LAYERS - 1:
            wp = wp.at[:, carry, carry].set(1.0)   # carry constant lane thru ReLU
        mats.append(wp)
    w_stack = jnp.stack(mats, axis=1).astype(param_dtype)  # (P, 4, K_PAD, FEAT)
    return w_stack, (k_pad, carry)


def pad_input(x, k_pad, carry, dtype=jnp.bfloat16):
    """(B, n_input) -> (B, K_PAD) with the constant bias-carry lane set to 1."""
    batch, n_in = x.shape
    xp = jnp.zeros((batch, k_pad), jnp.float32)
    xp = xp.at[:, :n_in].set(x.astype(jnp.float32))
    xp = xp.at[:, carry].set(1.0)
    return xp.astype(dtype)


def _ga_mlp_kernel(x_ref, w_ref, o_ref, *, group, k_pad):
    """One grid step = `group` candidates' full forward passes.

    x_ref: (B, K_PAD)           shared padded input, VMEM-resident across grid
    w_ref: (G, 4, K_PAD, FEAT)  this group's packed weights (biases folded in)
    o_ref: (G, B, FEAT)         lane-dense sigmoid output slabs
    """
    x = x_ref[...]
    for g in range(group):
        h = x
        for layer in range(NUM_LAYERS - 1):
            z = jnp.dot(h, w_ref[g, layer],
                        preferred_element_type=jnp.float32)
            # Keep only the K_PAD columns the next layer contracts over
            # (real outputs + constant carry lane; everything else is zero).
            h = jnp.maximum(z, 0.0)[:, :k_pad].astype(x_ref.dtype)
        logits = jnp.dot(h, w_ref[g, NUM_LAYERS - 1],
                         preferred_element_type=jnp.float32)
        # Sigmoid: exp and reciprocal both run on the EUP slot.
        sig = pl.reciprocal(1.0 + jnp.exp(-logits), approx=True)
        o_ref[g] = sig.astype(o_ref.dtype)


def ga_population_forward(x, w_stack, kdims, n_output, *, group_size=8):
    """Evaluate all P candidates on the same batch x in one pallas_call.

    x:       (B, n_input) float32
    w_stack: (P, 4, K_PAD, FEAT) bf16 from build_population_params
    returns: (P, B, n_output) float32
    """
    k_pad, carry = kdims
    population = w_stack.shape[0]
    batch = x.shape[0]

    group = max(1, min(group_size, population))
    p_pad = _round_up(population, group)
    if p_pad != population:
        w_stack = jnp.pad(
            w_stack, ((0, p_pad - population), (0, 0), (0, 0), (0, 0)))
    num_steps = p_pad // group

    x_pad = pad_input(x, k_pad, carry, dtype=w_stack.dtype)

    # VMEM per step (double-buffered weights) ~= 2*G*4*K_PAD*FEAT*2 bytes
    # (~640 KiB at G=8, bf16): far under the scoped default on v5e/v6e/v7x, so
    # no vmem_limit_bytes override needed.  On v5e, pipeline_mode=pl.Buffered(3)
    # on the weight spec is a further optional knob if the weight DMA is exposed.
    out_padded = pl.pallas_call(
        functools.partial(_ga_mlp_kernel, group=group, k_pad=k_pad),
        out_shape=jax.ShapeDtypeStruct((p_pad, batch, FEAT), jnp.float32),
        grid=(num_steps,),
        in_specs=[
            # shared input: constant index_map -> stays VMEM-resident
            pl.BlockSpec((batch, k_pad), lambda s: (0, 0)),
            # per-step group of candidates' packed weights
            pl.BlockSpec((group, NUM_LAYERS, k_pad, FEAT),
                         lambda s: (s, 0, 0, 0)),
        ],
        out_specs=pl.BlockSpec((group, batch, FEAT), lambda s: (s, 0, 0)),
        compiler_params=pltpu.CompilerParams(
            dimension_semantics=("parallel",)),
    )(x_pad, w_stack)

    return out_padded[:population, :, :n_output]


def ga_network_forward(x, flat_weights, n_input, n_h1, n_h2, n_h3, n_output):
    """Single-network forward (matches the original module's forward())."""
    w_stack, kdims = build_population_params(
        jnp.asarray(flat_weights, jnp.float32)[None, :],
        n_input, n_h1, n_h2, n_h3, n_output)
    return ga_population_forward(x, w_stack, kdims, n_output, group_size=1)[0]


if __name__ == "__main__":
    # Small shapes consistent with the module's __init__.
    n_input, n_h1, n_h2, n_h3, n_output = 16, 32, 32, 32, 8
    batch, population = 8, 16

    total_weights = (n_input * n_h1 + n_h1 +
                     n_h1 * n_h2 + n_h2 +
                     n_h2 * n_h3 + n_h3 +
                     n_h3 * n_output + n_output)

    key = jax.random.PRNGKey(0)
    k_w, k_x = jax.random.split(key)
    flat_pop = jax.random.normal(
        k_w, (population, total_weights), dtype=jnp.float32) * 0.1
    x = jax.random.normal(k_x, (batch, n_input), dtype=jnp.float32)

    w_stack, kdims = build_population_params(
        flat_pop, n_input, n_h1, n_h2, n_h3, n_output)

    out = ga_population_forward(x, w_stack, kdims, n_output, group_size=8)
    out = jax.block_until_ready(out)
    assert out.shape == (population, batch, n_output)

    k_pad, carry = kdims
    x_pad = pad_input(x, k_pad, carry)

    # Reference 1: identical padded bf16 math in plain JAX (tight tolerance).
    def matched_one(wp):                       # wp: (4, K_PAD, FEAT) bf16
        h = x_pad
        for layer in range(NUM_LAYERS - 1):
            z = jnp.dot(h, wp[layer], preferred_element_type=jnp.float32)
            h = jnp.maximum(z, 0.0)[:, :k_pad].astype(jnp.bfloat16)
        logits = jnp.dot(h, wp[NUM_LAYERS - 1],
                         preferred_element_type=jnp.float32)
        return (1.0 / (1.0 + jnp.exp(-logits)))[:, :n_output]

    ref_matched = jax.vmap(matched_one)(w_stack)
    err_m = float(jnp.max(jnp.abs(out - ref_matched)))
    assert err_m < 1e-2, err_m

    # Reference 2: full-precision f32 math, exactly the PyTorch module.
    def ref_one(fw):
        a = n_input * n_h1
        aa = a + n_h1
        b = aa + n_h1 * n_h2
        bb = b + n_h2
        c = bb + n_h2 * n_h3
        cc = c + n_h3
        w1 = fw[0:a].reshape(n_h1, n_input); b1 = fw[a:aa]
        w2 = fw[aa:b].reshape(n_h2, n_h1);   b2 = fw[b:bb]
        w3 = fw[bb:c].reshape(n_h3, n_h2);   b3 = fw[c:cc]
        w4 = fw[cc:cc + n_h3 * n_output].reshape(n_output, n_h3)
        b4 = fw[cc + n_h3 * n_output:]
        h = jnp.maximum(x @ w1.T + b1, 0.0)
        h = jnp.maximum(h @ w2.T + b2, 0.0)
        h = jnp.maximum(h @ w3.T + b3, 0.0)
        return 1.0 / (1.0 + jnp.exp(-(h @ w4.T + b4)))

    ref_f32 = jax.vmap(ref_one)(flat_pop)
    err_f = float(jnp.max(jnp.abs(out - ref_f32)))
    assert err_f < 3e-2, err_f

    print("KERNEL_OK")
</pallas_src>

<mosaic_0001>
module attributes {stable_mosaic.version = 11 : i64} {
  func.func @_ga_mlp_kernel(%arg0: i32, %arg1: memref<8x40xbf16, #tpu.memory_space<vmem>>, %arg2: memref<8x4x40x128xbf16, #tpu.memory_space<vmem>>, %arg3: memref<8x8x128xf32, #tpu.memory_space<vmem>>) attributes {dimension_semantics = [#tpu.dimension_semantics<parallel>], iteration_bounds = array<i64: 2>, scalar_prefetch = 0 : i64, scratch_operands = 0 : i64, tpu.core_type = #tpu.core_type<tc>, window_params = [{pipeline_mode = #tpu.pipeline_mode<synchronous>, transform_indices = @transform_0, window_bounds = array<i64: 8, 40>}, {transform_indices = @transform_1, window_bounds = array<i64: 8, 4, 40, 128>}, {transform_indices = @transform_2, window_bounds = array<i64: 8, 8, 128>}]} {
    %c0 = arith.constant 0 : index
    %c0_0 = arith.constant 0 : index
    %0 = vector.load %arg1[%c0, %c0_0] : memref<8x40xbf16, #tpu.memory_space<vmem>>, vector<8x40xbf16>
    %c0_1 = arith.constant 0 : index
    %c0_2 = arith.constant 0 : index
    %c0_3 = arith.constant 0 : index
    %c0_4 = arith.constant 0 : index
    %1 = vector.load %arg2[%c0_1, %c0_2, %c0_3, %c0_4] : memref<8x4x40x128xbf16, #tpu.memory_space<vmem>>, vector<1x1x40x128xbf16>
    %2 = vector.shape_cast %1 : vector<1x1x40x128xbf16> to vector<40x128xbf16>
    %cst = arith.constant dense<0.000000e+00> : vector<8x128xf32>
    %3 = tpu.matmul %0, %2, %cst {dimension_numbers = #tpu.dot_dimension_numbers<[1], [0], [0], [1], [0, 0, 1, 1], [], []>} : vector<8x40xbf16>, vector<40x128xbf16>, vector<8x128xf32> -> vector<8x128xf32>
    %cst_5 = arith.constant 0.000000e+00 : f32
    %4 = vector.broadcast %cst_5 : f32 to vector<8x128xf32>
    %5 = arith.maximumf %3, %4 : vector<8x128xf32>
    %6 = vector.extract_strided_slice %5 {offsets = [0, 0], sizes = [8, 40], strides = [1, 1]} : vector<8x128xf32> to vector<8x40xf32>
    %7 = arith.truncf %6 : vector<8x40xf32> to vector<8x40xbf16>
    %c0_6 = arith.constant 0 : index
    %c1 = arith.constant 1 : index
    %c0_7 = arith.constant 0 : index
    %c0_8 = arith.constant 0 : index
    %8 = vector.load %arg2[%c0_6, %c1, %c0_7, %c0_8] : memref<8x4x40x128xbf16, #tpu.memory_space<vmem>>, vector<1x1x40x128xbf16>
    %9 = vector.shape_cast %8 : vector<1x1x40x128xbf16> to vector<40x128xbf16>
    %cst_9 = arith.constant dense<0.000000e+00> : vector<8x128xf32>
    %10 = tpu.matmul %7, %9, %cst_9 {dimension_numbers = #tpu.dot_dimension_numbers<[1], [0], [0], [1], [0, 0, 1, 1], [], []>} : vector<8x40xbf16>, vector<40x128xbf16>, vector<8x128xf32> -> vector<8x128xf32>
    %cst_10 = arith.constant 0.000000e+00 : f32
    %11 = vector.broadcast %cst_10 : f32 to vector<8x128xf32>
    %12 = arith.maximumf %10, %11 : vector<8x128xf32>
    %13 = vector.extract_strided_slice %12 {offsets = [0, 0], sizes = [8, 40], strides = [1, 1]} : vector<8x128xf32> to vector<8x40xf32>
    %14 = arith.truncf %13 : vector<8x40xf32> to vector<8x40xbf16>
    %c0_11 = arith.constant 0 : index
    %c2 = arith.constant 2 : index
    %c0_12 = arith.constant 0 : index
    %c0_13 = arith.constant 0 : index
    %15 = vector.load %arg2[%c0_11, %c2, %c0_12, %c0_13] : memref<8x4x40x128xbf16, #tpu.memory_space<vmem>>, vector<1x1x40x128xbf16>
    %16 = vector.shape_cast %15 : vector<1x1x40x128xbf16> to vector<40x128xbf16>
    %cst_14 = arith.constant dense<0.000000e+00> : vector<8x128xf32>
    %17 = tpu.matmul %14, %16, %cst_14 {dimension_numbers = #tpu.dot_dimension_numbers<[1], [0], [0], [1], [0, 0, 1, 1], [], []>} : vector<8x40xbf16>, vector<40x128xbf16>, vector<8x128xf32> -> vector<8x128xf32>
    %cst_15 = arith.constant 0.000000e+00 : f32
    %18 = vector.broadcast %cst_15 : f32 to vector<8x128xf32>
    %19 = arith.maximumf %17, %18 : vector<8x128xf32>
    %20 = vector.extract_strided_slice %19 {offsets = [0, 0], sizes = [8, 40], strides = [1, 1]} : vector<8x128xf32> to vector<8x40xf32>
    %21 = arith.truncf %20 : vector<8x40xf32> to vector<8x40xbf16>
    %c0_16 = arith.constant 0 : index
    %c3 = arith.constant 3 : index
    %c0_17 = arith.constant 0 : index
    %c0_18 = arith.constant 0 : index
    %22 = vector.load %arg2[%c0_16, %c3, %c0_17, %c0_18] : memref<8x4x40x128xbf16, #tpu.memory_space<vmem>>, vector<1x1x40x128xbf16>
    %23 = vector.shape_cast %22 : vector<1x1x40x128xbf16> to vector<40x128xbf16>
    %cst_19 = arith.constant dense<0.000000e+00> : vector<8x128xf32>
    %24 = tpu.matmul %21, %23, %cst_19 {dimension_numbers = #tpu.dot_dimension_numbers<[1], [0], [0], [1], [0, 0, 1, 1], [], []>} : vector<8x40xbf16>, vector<40x128xbf16>, vector<8x128xf32> -> vector<8x128xf32>
    %cst_20 = arith.constant 0.000000e+00 : f32
    %25 = vector.broadcast %cst_20 : f32 to vector<8x128xf32>
    %26 = arith.subf %25, %24 : vector<8x128xf32>
    %27 = math.exp %26 : vector<8x128xf32>
    %cst_21 = arith.constant 1.000000e+00 : f32
    %28 = vector.broadcast %cst_21 : f32 to vector<8x128xf32>
    %29 = arith.addf %28, %27 : vector<8x128xf32>
    %30 = tpu.reciprocal %29 {approx = true} : vector<8x128xf32> -> vector<8x128xf32>
    %c0_22 = arith.constant 0 : index
    %c0_23 = arith.constant 0 : index
    %c0_24 = arith.constant 0 : index
    %31 = vector.load %arg3[%c0_22, %c0_23, %c0_24] : memref<8x8x128xf32, #tpu.memory_space<vmem>>, vector<1x8x128xf32>
    %32 = vector.shape_cast %31 : vector<1x8x128xf32> to vector<8x128xf32>
    %33 = vector.shape_cast %30 : vector<8x128xf32> to vector<1x8x128xf32>
    tpu.vector_store %arg3[%c0_22, %c0_23, %c0_24], %33 {strides = array<i32>} : memref<8x8x128xf32, #tpu.memory_space<vmem>>, vector<1x8x128xf32>,
    %c1_25 = arith.constant 1 : index
    %c0_26 = arith.constant 0 : index
    %c0_27 = arith.constant 0 : index
    %c0_28 = arith.constant 0 : index
    %34 = vector.load %arg2[%c1_25, %c0_26, %c0_27, %c0_28] : memref<8x4x40x128xbf16, #tpu.memory_space<vmem>>, vector<1x1x40x128xbf16>
    %35 = vector.shape_cast %34 : vector<1x1x40x128xbf16> to vector<40x128xbf16>
    %cst_29 = arith.constant dense<0.000000e+00> : vector<8x128xf32>
    %36 = tpu.matmul %0, %35, %cst_29 {dimension_numbers = #tpu.dot_dimension_numbers<[1], [0], [0], [1], [0, 0, 1, 1], [], []>} : vector<8x40xbf16>, vector<40x128xbf16>, vector<8x128xf32> -> vector<8x128xf32>
    %cst_30 = arith.constant 0.000000e+00 : f32
    %37 = vector.broadcast %cst_30 : f32 to vector<8x128xf32>
    %38 = arith.maximumf %36, %37 : vector<8x128xf32>
    %39 = vector.extract_strided_slice %38 {offsets = [0, 0], sizes = [8, 40], strides = [1, 1]} : vector<8x128xf32> to vector<8x40xf32>
    %40 = arith.truncf %39 : vector<8x40xf32> to vector<8x40xbf16>
    %c1_31 = arith.constant 1 : index
    %c1_32 = arith.constant 1 : index
    %c0_33 = arith.constant 0 : index
    %c0_34 = arith.constant 0 : index
    %41 = vector.load %arg2[%c1_31, %c1_32, %c0_33, %c0_34] : memref<8x4x40x128xbf16, #tpu.memory_space<vmem>>, vector<1x1x40x128xbf16>
    %42 = vector.shape_cast %41 : vector<1x1x40x128xbf16> to vector<40x128xbf16>
    %cst_35 = arith.constant dense<0.000000e+00> : vector<8x128xf32>
    %43 = tpu.matmul %40, %42, %cst_35 {dimension_numbers = #tpu.dot_dimension_numbers<[1], [0], [0], [1], [0, 0, 1, 1], [], []>} : vector<8x40xbf16>, vector<40x128xbf16>, vector<8x128xf32> -> vector<8x128xf32>
    %cst_36 = arith.constant 0.000000e+00 : f32
    %44 = vector.broadcast %cst_36 : f32 to vector<8x128xf32>
    %45 = arith.maximumf %43, %44 : vector<8x128xf32>
    %46 = vector.extract_strided_slice %45 {offsets = [0, 0], sizes = [8, 40], strides = [1, 1]} : vector<8x128xf32> to vector<8x40xf32>
    %47 = arith.truncf %46 : vector<8x40xf32> to vector<8x40xbf16>
    %c1_37 = arith.constant 1 : index
    %c2_38 = arith.constant 2 : index
    %c0_39 = arith.constant 0 : index
    %c0_40 = arith.constant 0 : index
    %48 = vector.load %arg2[%c1_37, %c2_38, %c0_39, %c0_40] : memref<8x4x40x128xbf16, #tpu.memory_space<vmem>>, vector<1x1x40x128xbf16>
    %49 = vector.shape_cast %48 : vector<1x1x40x128xbf16> to vector<40x128xbf16>
    %cst_41 = arith.constant dense<0.000000e+00> : vector<8x128xf32>
    %50 = tpu.matmul %47, %49, %cst_41 {dimension_numbers = #tpu.dot_dimension_numbers<[1], [0], [0], [1], [0, 0, 1, 1], [], []>} : vector<8x40xbf16>, vector<40x128xbf16>, vector<8x128xf32> -> vector<8x128xf32>
    %cst_42 = arith.constant 0.000000e+00 : f32
    %51 = vector.broadcast %cst_42 : f32 to vector<8x128xf32>
    %52 = arith.maximumf %50, %51 : vector<8x128xf32>
    %53 = vector.extract_strided_slice %52 {offsets = [0, 0], sizes = [8, 40], strides = [1, 1]} : vector<8x128xf32> to vector<8x40xf32>
    %54 = arith.truncf %53 : vector<8x40xf32> to vector<8x40xbf16>
    %c1_43 = arith.constant 1 : index
    %c3_44 = arith.constant 3 : index
    %c0_45 = arith.constant 0 : index
    %c0_46 = arith.constant 0 : index
    %55 = vector.load %arg2[%c1_43, %c3_44, %c0_45, %c0_46] : memref<8x4x40x128xbf16, #tpu.memory_space<vmem>>, vector<1x1x40x128xbf16>
    %56 = vector.shape_cast %55 : vector<1x1x40x128xbf16> to vector<40x128xbf16>
    %cst_47 = arith.constant dense<0.000000e+00> : vector<8x128xf32>
    %57 = tpu.matmul %54, %56, %cst_47 {dimension_numbers = #tpu.dot_dimension_numbers<[1], [0], [0], [1], [0, 0, 1, 1], [], []>} : vector<8x40xbf16>, vector<40x128xbf16>, vector<8x128xf32> -> vector<8x128xf32>
    %cst_48 = arith.constant 0.000000e+00 : f32
    %58 = vector.broadcast %cst_48 : f32 to vector<8x128xf32>
    %59 = arith.subf %58, %57 : vector<8x128xf32>
    %60 = math.exp %59 : vector<8x128xf32>
    %cst_49 = arith.constant 1.000000e+00 : f32
    %61 = vector.broadcast %cst_49 : f32 to vector<8x128xf32>
    %62 = arith.addf %61, %60 : vector<8x128xf32>
    %63 = tpu.reciprocal %62 {approx = true} : vector<8x128xf32> -> vector<8x128xf32>
    %c1_50 = arith.constant 1 : index
    %c0_51 = arith.constant 0 : index
    %c0_52 = arith.constant 0 : index
    %64 = vector.load %arg3[%c1_50, %c0_51, %c0_52] : memref<8x8x128xf32, #tpu.memory_space<vmem>>, vector<1x8x128xf32>
    %65 = vector.shape_cast %64 : vector<1x8x128xf32> to vector<8x128xf32>
    %66 = vector.shape_cast %63 : vector<8x128xf32> to vector<1x8x128xf32>
    tpu.vector_store %arg3[%c1_50, %c0_51, %c0_52], %66 {strides = array<i32>} : memref<8x8x128xf32, #tpu.memory_space<vmem>>, vector<1x8x128xf32>,
    %c2_53 = arith.constant 2 : index
    %c0_54 = arith.constant 0 : index
    %c0_55 = arith.constant 0 : index
    %c0_56 = arith.constant 0 : index
    %67 = vector.load %arg2[%c2_53, %c0_54, %c0_55, %c0_56] : memref<8x4x40x128xbf16, #tpu.memory_space<vmem>>, vector<1x1x40x128xbf16>
    %68 = vector.shape_cast %67 : vector<1x1x40x128xbf16> to vector<40x128xbf16>
    %cst_57 = arith.constant dense<0.000000e+00> : vector<8x128xf32>
    %69 = tpu.matmul %0, %68, %cst_57 {dimension_numbers = #tpu.dot_dimension_numbers<[1], [0], [0], [1], [0, 0, 1, 1], [], []>} : vector<8x40xbf16>, vector<40x128xbf16>, vector<8x128xf32> -> vector<8x128xf32>
    %cst_58 = arith.constant 0.000000e+00 : f32
    %70 = vector.broadcast %cst_58 : f32 to vector<8x128xf32>
    %71 = arith.maximumf %69, %70 : vector<8x128xf32>
    %72 = vector.extract_strided_slice %71 {offsets = [0, 0], sizes = [8, 40], strides = [1, 1]} : vector<8x128xf32> to vector<8x40xf32>
    %73 = arith.truncf %72 : vector<8x40xf32> to vector<8x40xbf16>
    %c2_59 = arith.constant 2 : index
    %c1_60 = arith.constant 1 : index
    %c0_61 = arith.constant 0 : index
    %c0_62 = arith.constant 0 : index
    %74 = vector.load %arg2[%c2_59, %c1_60, %c0_61, %c0_62] : memref<8x4x40x128xbf16, #tpu.memory_space<vmem>>, vector<1x1x40x128xbf16>
    %75 = vector.shape_cast %74 : vector<1x1x40x128xbf16> to vector<40x128xbf16>
    %cst_63 = arith.constant dense<0.000000e+00> : vector<8x128xf32>
    %76 = tpu.matmul %73, %75, %cst_63 {dimension_numbers = #tpu.dot_dimension_numbers<[1], [0], [0], [1], [0, 0, 1, 1], [], []>} : vector<8x40xbf16>, vector<40x128xbf16>, vector<8x128xf32> -> vector<8x128xf32>
    %cst_64 = arith.constant 0.000000e+00 : f32
    %77 = vector.broadcast %cst_64 : f32 to vector<8x128xf32>
    %78 = arith.maximumf %76, %77 : vector<8x128xf32>
    %79 = vector.extract_strided_slice %78 {offsets = [0, 0], sizes = [8, 40], strides = [1, 1]} : vector<8x128xf32> to vector<8x40xf32>
    %80 = arith.truncf %79 : vector<8x40xf32> to vector<8x40xbf16>
    %c2_65 = arith.constant 2 : index
    %c2_66 = arith.constant 2 : index
    %c0_67 = arith.constant 0 : index
    %c0_68 = arith.constant 0 : index
    %81 = vector.load %arg2[%c2_65, %c2_66, %c0_67, %c0_68] : memref<8x4x40x128xbf16, #tpu.memory_space<vmem>>, vector<1x1x40x128xbf16>
    %82 = vector.shape_cast %81 : vector<1x1x40x128xbf16> to vector<40x128xbf16>
    %cst_69 = arith.constant dense<0.000000e+00> : vector<8x128xf32>
    %83 = tpu.matmul %80, %82, %cst_69 {dimension_numbers = #tpu.dot_dimension_numbers<[1], [0], [0], [1], [0, 0, 1, 1], [], []>} : vector<8x40xbf16>, vector<40x128xbf16>, vector<8x128xf32> -> vector<8x128xf32>
    %cst_70 = arith.constant 0.000000e+00 : f32
    %84 = vector.broadcast %cst_70 : f32 to vector<8x128xf32>
    %85 = arith.maximumf %83, %84 : vector<8x128xf32>
    %86 = vector.extract_strided_slice %85 {offsets = [0, 0], sizes = [8, 40], strides = [1, 1]} : vector<8x128xf32> to vector<8x40xf32>
    %87 = arith.truncf %86 : vector<8x40xf32> to vector<8x40xbf16>
    %c2_71 = arith.constant 2 : index
    %c3_72 = arith.constant 3 : index
    %c0_73 = arith.constant 0 : index
    %c0_74 = arith.constant 0 : index
    %88 = vector.load %arg2[%c2_71, %c3_72, %c0_73, %c0_74] : memref<8x4x40x128xbf16, #tpu.memory_space<vmem>>, vector<1x1x40x128xbf16>
    %89 = vector.shape_cast %88 : vector<1x1x40x128xbf16> to vector<40x128xbf16>
    %cst_75 = arith.constant dense<0.000000e+00> : vector<8x128xf32>
    %90 = tpu.matmul %87, %89, %cst_75 {dimension_numbers = #tpu.dot_dimension_numbers<[1], [0], [0], [1], [0, 0, 1, 1], [], []>} : vector<8x40xbf16>, vector<40x128xbf16>, vector<8x128xf32> -> vector<8x128xf32>
    %cst_76 = arith.constant 0.000000e+00 : f32
    %91 = vector.broadcast %cst_76 : f32 to vector<8x128xf32>
    %92 = arith.subf %91, %90 : vector<8x128xf32>
    %93 = math.exp %92 : vector<8x128xf32>
    %cst_77 = arith.constant 1.000000e+00 : f32
    %94 = vector.broadcast %cst_77 : f32 to vector<8x128xf32>
    %95 = arith.addf %94, %93 : vector<8x128xf32>
    %96 = tpu.reciprocal %95 {approx = true} : vector<8x128xf32> -> vector<8x128xf32>
    %c2_78 = arith.constant 2 : index
    %c0_79 = arith.constant 0 : index
    %c0_80 = arith.constant 0 : index
    %97 = vector.load %arg3[%c2_78, %c0_79, %c0_80] : memref<8x8x128xf32, #tpu.memory_space<vmem>>, vector<1x8x128xf32>
    %98 = vector.shape_cast %97 : vector<1x8x128xf32> to vector<8x128xf32>
    %99 = vector.shape_cast %96 : vector<8x128xf32> to vector<1x8x128xf32>
    tpu.vector_store %arg3[%c2_78, %c0_79, %c0_80], %99 {strides = array<i32>} : memref<8x8x128xf32, #tpu.memory_space<vmem>>, vector<1x8x128xf32>,
    %c3_81 = arith.constant 3 : index
    %c0_82 = arith.constant 0 : index
    %c0_83 = arith.constant 0 : index
    %c0_84 = arith.constant 0 : index
    %100 = vector.load %arg2[%c3_81, %c0_82, %c0_83, %c0_84] : memref<8x4x40x128xbf16, #tpu.memory_space<vmem>>, vector<1x1x40x128xbf16>
    %101 = vector.shape_cast %100 : vector<1x1x40x128xbf16> to vector<40x128xbf16>
    %cst_85 = arith.constant dense<0.000000e+00> : vector<8x128xf32>
    %102 = tpu.matmul %0, %101, %cst_85 {dimension_numbers = #tpu.dot_dimension_numbers<[1], [0], [0], [1], [0, 0, 1, 1], [], []>} : vector<8x40xbf16>, vector<40x128xbf16>, vector<8x128xf32> -> vector<8x128xf32>
    %cst_86 = arith.constant 0.000000e+00 : f32
    %103 = vector.broadcast %cst_86 : f32 to vector<8x128xf32>
    %104 = arith.maximumf %102, %103 : vector<8x128xf32>
    %105 = vector.extract_strided_slice %104 {offsets = [0, 0], sizes = [8, 40], strides = [1, 1]} : vector<8x128xf32> to vector<8x40xf32>
    %106 = arith.truncf %105 : vector<8x40xf32> to vector<8x40xbf16>
    %c3_87 = arith.constant 3 : index
    %c1_88 = arith.constant 1 : index
    %c0_89 = arith.constant 0 : index
    %c0_90 = arith.constant 0 : index
    %107 = vector.load %arg2[%c3_87, %c1_88, %c0_89, %c0_90] : memref<8x4x40x128xbf16, #tpu.memory_space<vmem>>, vector<1x1x40x128xbf16>
    %108 = vector.shape_cast %107 : vector<1x1x40x128xbf16> to vector<40x128xbf16>
    %cst_91 = arith.constant dense<0.000000e+00> : vector<8x128xf32>
    %109 = tpu.matmul %106, %108, %cst_91 {dimension_numbers = #tpu.dot_dimension_numbers<[1], [0], [0], [1], [0, 0, 1, 1], [], []>} : vector<8x40xbf16>, vector<40x128xbf16>, vector<8x128xf32> -> vector<8x128xf32>
    %cst_92 = arith.constant 0.000000e+00 : f32
    %110 = vector.broadcast %cst_92 : f32 to vector<8x128xf32>
    %111 = arith.maximumf %109, %110 : vector<8x128xf32>
    %112 = vector.extract_strided_slice %111 {offsets = [0, 0], sizes = [8, 40], strides = [1, 1]} : vector<8x128xf32> to vector<8x40xf32>
    %113 = arith.truncf %112 : vector<8x40xf32> to vector<8x40xbf16>
    %c3_93 = arith.constant 3 : index
    %c2_94 = arith.constant 2 : index
    %c0_95 = arith.constant 0 : index
    %c0_96 = arith.constant 0 : index
    %114 = vector.load %arg2[%c3_93, %c2_94, %c0_95, %c0_96] : memref<8x4x40x128xbf16, #tpu.memory_space<vmem>>, vector<1x1x40x128xbf16>
    %115 = vector.shape_cast %114 : vector<1x1x40x128xbf16> to vector<40x128xbf16>
    %cst_97 = arith.constant dense<0.000000e+00> : vector<8x128xf32>
    %116 = tpu.matmul %113, %115, %cst_97 {dimension_numbers = #tpu.dot_dimension_numbers<[1], [0], [0], [1], [0, 0, 1, 1], [], []>} : vector<8x40xbf16>, vector<40x128xbf16>, vector<8x128xf32> -> vector<8x128xf32>
    %cst_98 = arith.constant 0.000000e+00 : f32
    %117 = vector.broadcast %cst_98 : f32 to vector<8x128xf32>
    %118 = arith.maximumf %116, %117 : vector<8x128xf32>
    %119 = vector.extract_strided_slice %118 {offsets = [0, 0], sizes = [8, 40], strides = [1, 1]} : vector<8x128xf32> to vector<8x40xf32>
    %120 = arith.truncf %119 : vector<8x40xf32> to vector<8x40xbf16>
    %c3_99 = arith.constant 3 : index
    %c3_100 = arith.constant 3 : index
    %c0_101 = arith.constant 0 : index
    %c0_102 = arith.constant 0 : index
    %121 = vector.load %arg2[%c3_99, %c3_100, %c0_101, %c0_102] : memref<8x4x40x128xbf16, #tpu.memory_space<vmem>>, vector<1x1x40x128xbf16>
    %122 = vector.shape_cast %121 : vector<1x1x40x128xbf16> to vector<40x128xbf16>
    %cst_103 = arith.constant dense<0.000000e+00> : vector<8x128xf32>
    %123 = tpu.matmul %120, %122, %cst_103 {dimension_numbers = #tpu.dot_dimension_numbers<[1], [0], [0], [1], [0, 0, 1, 1], [], []>} : vector<8x40xbf16>, vector<40x128xbf16>, vector<8x128xf32> -> vector<8x128xf32>
    %cst_104 = arith.constant 0.000000e+00 : f32
    %124 = vector.broadcast %cst_104 : f32 to vector<8x128xf32>
    %125 = arith.subf %124, %123 : vector<8x128xf32>
    %126 = math.exp %125 : vector<8x128xf32>
    %cst_105 = arith.constant 1.000000e+00 : f32
    %127 = vector.broadcast %cst_105 : f32 to vector<8x128xf32>
    %128 = arith.addf %127, %126 : vector<8x128xf32>
    %129 = tpu.reciprocal %128 {approx = true} : vector<8x128xf32> -> vector<8x128xf32>
    %c3_106 = arith.constant 3 : index
    %c0_107 = arith.constant 0 : index
    %c0_108 = arith.constant 0 : index
    %130 = vector.load %arg3[%c3_106, %c0_107, %c0_108] : memref<8x8x128xf32, #tpu.memory_space<vmem>>, vector<1x8x128xf32>
    %131 = vector.shape_cast %130 : vector<1x8x128xf32> to vector<8x128xf32>
    %132 = vector.shape_cast %129 : vector<8x128xf32> to vector<1x8x128xf32>
    tpu.vector_store %arg3[%c3_106, %c0_107, %c0_108], %132 {strides = array<i32>} : memref<8x8x128xf32, #tpu.memory_space<vmem>>, vector<1x8x128xf32>,
    %c4 = arith.constant 4 : index
    %c0_109 = arith.constant 0 : index
    %c0_110 = arith.constant 0 : index
    %c0_111 = arith.constant 0 : index
    %133 = vector.load %arg2[%c4, %c0_109, %c0_110, %c0_111] : memref<8x4x40x128xbf16, #tpu.memory_space<vmem>>, vector<1x1x40x128xbf16>
    %134 = vector.shape_cast %133 : vector<1x1x40x128xbf16> to vector<40x128xbf16>
    %cst_112 = arith.constant dense<0.000000e+00> : vector<8x128xf32>
    %135 = tpu.matmul %0, %134, %cst_112 {dimension_numbers = #tpu.dot_dimension_numbers<[1], [0], [0], [1], [0, 0, 1, 1], [], []>} : vector<8x40xbf16>, vector<40x128xbf16>, vector<8x128xf32> -> vector<8x128xf32>
    %cst_113 = arith.constant 0.000000e+00 : f32
    %136 = vector.broadcast %cst_113 : f32 to vector<8x128xf32>
    %137 = arith.maximumf %135, %136 : vector<8x128xf32>
    %138 = vector.extract_strided_slice %137 {offsets = [0, 0], sizes = [8, 40], strides = [1, 1]} : vector<8x128xf32> to vector<8x40xf32>
    %139 = arith.truncf %138 : vector<8x40xf32> to vector<8x40xbf16>
    %c4_114 = arith.constant 4 : index
    %c1_115 = arith.constant 1 : index
    %c0_116 = arith.constant 0 : index
    %c0_117 = arith.constant 0 : index
    %140 = vector.load %arg2[%c4_114, %c1_115, %c0_116, %c0_117] : memref<8x4x40x128xbf16, #tpu.memory_space<vmem>>, vector<1x1x40x128xbf16>
    %141 = vector.shape_cast %140 : vector<1x1x40x128xbf16> to vector<40x128xbf16>
    %cst_118 = arith.constant dense<0.000000e+00> : vector<8x128xf32>
    %142 = tpu.matmul %139, %141, %cst_118 {dimension_numbers = #tpu.dot_dimension_numbers<[1], [0], [0], [1], [0, 0, 1, 1], [], []>} : vector<8x40xbf16>, vector<40x128xbf16>, vector<8x128xf32> -> vector<8x128xf32>
    %cst_119 = arith.constant 0.000000e+00 : f32
    %143 = vector.broadcast %cst_119 : f32 to vector<8x128xf32>
    %144 = arith.maximumf %142, %143 : vector<8x128xf32>
    %145 = vector.extract_strided_slice %144 {offsets = [0, 0], sizes = [8, 40], strides = [1, 1]} : vector<8x128xf32> to vector<8x40xf32>
    %146 = arith.truncf %145 : vector<8x40xf32> to vector<8x40xbf16>
    %c4_120 = arith.constant 4 : index
    %c2_121 = arith.constant 2 : index
    %c0_122 = arith.constant 0 : index
    %c0_123 = arith.constant 0 : index
    %147 = vector.load %arg2[%c4_120, %c2_121, %c0_122, %c0_123] : memref<8x4x40x128xbf16, #tpu.memory_space<vmem>>, vector<1x1x40x128xbf16>
    %148 = vector.shape_cast %147 : vector<1x1x40x128xbf16> to vector<40x128xbf16>
    %cst_124 = arith.constant dense<0.000000e+00> : vector<8x128xf32>
    %149 = tpu.matmul %146, %148, %cst_124 {dimension_numbers = #tpu.dot_dimension_numbers<[1], [0], [0], [1], [0, 0, 1, 1], [], []>} : vector<8x40xbf16>, vector<40x128xbf16>, vector<8x128xf32> -> vector<8x128xf32>
    %cst_125 = arith.constant 0.000000e+00 : f32
    %150 = vector.broadcast %cst_125 : f32 to vector<8x128xf32>
    %151 = arith.maximumf %149, %150 : vector<8x128xf32>
    %152 = vector.extract_strided_slice %151 {offsets = [0, 0], sizes = [8, 40], strides = [1, 1]} : vector<8x128xf32> to vector<8x40xf32>
    %153 = arith.truncf %152 : vector<8x40xf32> to vector<8x40xbf16>
    %c4_126 = arith.constant 4 : index
    %c3_127 = arith.constant 3 : index
    %c0_128 = arith.constant 0 : index
    %c0_129 = arith.constant 0 : index
    %154 = vector.load %arg2[%c4_126, %c3_127, %c0_128, %c0_129] : memref<8x4x40x128xbf16, #tpu.memory_space<vmem>>, vector<1x1x40x128xbf16>
    %155 = vector.shape_cast %154 : vector<1x1x40x128xbf16> to vector<40x128xbf16>
    %cst_130 = arith.constant dense<0.000000e+00> : vector<8x128xf32>
    %156 = tpu.matmul %153, %155, %cst_130 {dimension_numbers = #tpu.dot_dimension_numbers<[1], [0], [0], [1], [0, 0, 1, 1], [], []>} : vector<8x40xbf16>, vector<40x128xbf16>, vector<8x128xf32> -> vector<8x128xf32>
    %cst_131 = arith.constant 0.000000e+00 : f32
    %157 = vector.broadcast %cst_131 : f32 to vector<8x128xf32>
    %158 = arith.subf %157, %156 : vector<8x128xf32>
    %159 = math.exp %158 : vector<8x128xf32>
    %cst_132 = arith.constant 1.000000e+00 : f32
    %160 = vector.broadcast %cst_132 : f32 to vector<8x128xf32>
    %161 = arith.addf %160, %159 : vector<8x128xf32>
    %162 = tpu.reciprocal %161 {approx = true} : vector<8x128xf32> -> vector<8x128xf32>
    %c4_133 = arith.constant 4 : index
    %c0_134 = arith.constant 0 : index
    %c0_135 = arith.constant 0 : index
    %163 = vector.load %arg3[%c4_133, %c0_134, %c0_135] : memref<8x8x128xf32, #tpu.memory_space<vmem>>, vector<1x8x128xf32>
    %164 = vector.shape_cast %163 : vector<1x8x128xf32> to vector<8x128xf32>
    %165 = vector.shape_cast %162 : vector<8x128xf32> to vector<1x8x128xf32>
    tpu.vector_store %arg3[%c4_133, %c0_134, %c0_135], %165 {strides = array<i32>} : memref<8x8x128xf32, #tpu.memory_space<vmem>>, vector<1x8x128xf32>,
    %c5 = arith.constant 5 : index
    %c0_136 = arith.constant 0 : index
    %c0_137 = arith.constant 0 : index
    %c0_138 = arith.constant 0 : index
    %166 = vector.load %arg2[%c5, %c0_136, %c0_137, %c0_138] : memref<8x4x40x128xbf16, #tpu.memory_space<vmem>>, vector<1x1x40x128xbf16>
    %167 = vector.shape_cast %166 : vector<1x1x40x128xbf16> to vector<40x128xbf16>
    %cst_139 = arith.constant dense<0.000000e+00> : vector<8x128xf32>
    %168 = tpu.matmul %0, %167, %cst_139 {dimension_numbers = #tpu.dot_dimension_numbers<[1], [0], [0], [1], [0, 0, 1, 1], [], []>} : vector<8x40xbf16>, vector<40x128xbf16>, vector<8x128xf32> -> vector<8x128xf32>
    %cst_140 = arith.constant 0.000000e+00 : f32
    %169 = vector.broadcast %cst_140 : f32 to vector<8x128xf32>
    %170 = arith.maximumf %168, %169 : vector<8x128xf32>
    %171 = vector.extract_strided_slice %170 {offsets = [0, 0], sizes = [8, 40], strides = [1, 1]} : vector<8x128xf32> to vector<8x40xf32>
    %172 = arith.truncf %171 : vector<8x40xf32> to vector<8x40xbf16>
    %c5_141 = arith.constant 5 : index
    %c1_142 = arith.constant 1 : index
    %c0_143 = arith.constant 0 : index
    %c0_144 = arith.constant 0 : index
    %173 = vector.load %arg2[%c5_141, %c1_142, %c0_143, %c0_144] : memref<8x4x40x128xbf16, #tpu.memory_space<vmem>>, vector<1x1x40x128xbf16>
    %174 = vector.shape_cast %173 : vector<1x1x40x128xbf16> to vector<40x128xbf16>
    %cst_145 = arith.constant dense<0.000000e+00> : vector<8x128xf32>
    %175 = tpu.matmul %172, %174, %cst_145 {dimension_numbers = #tpu.dot_dimension_numbers<[1], [0], [0], [1], [0, 0, 1, 1], [], []>} : vector<8x40xbf16>, vector<40x128xbf16>, vector<8x128xf32> -> vector<8x128xf32>
    %cst_146 = arith.constant 0.000000e+00 : f32
    %176 = vector.broadcast %cst_146 : f32 to vector<8x128xf32>
    %177 = arith.maximumf %175, %176 : vector<8x128xf32>
    %178 = vector.extract_strided_slice %177 {offsets = [0, 0], sizes = [8, 40], strides = [1, 1]} : vector<8x128xf32> to vector<8x40xf32>
    %179 = arith.truncf %178 : vector<8x40xf32> to vector<8x40xbf16>
    %c5_147 = arith.constant 5 : index
    %c2_148 = arith.constant 2 : index
    %c0_149 = arith.constant 0 : index
    %c0_150 = arith.constant 0 : index
    %180 = vector.load %arg2[%c5_147, %c2_148, %c0_149, %c0_150] : memref<8x4x40x128xbf16, #tpu.memory_space<vmem>>, vector<1x1x40x128xbf16>
    %181 = vector.shape_cast %180 : vector<1x1x40x128xbf16> to vector<40x128xbf16>
    %cst_151 = arith.constant dense<0.000000e+00> : vector<8x128xf32>
    %182 = tpu.matmul %179, %181, %cst_151 {dimension_numbers = #tpu.dot_dimension_numbers<[1], [0], [0], [1], [0, 0, 1, 1], [], []>} : vector<8x40xbf16>, vector<40x128xbf16>, vector<8x128xf32> -> vector<8x128xf32>
    %cst_152 = arith.constant 0.000000e+00 : f32
    %183 = vector.broadcast %cst_152 : f32 to vector<8x128xf32>
    %184 = arith.maximumf %182, %183 : vector<8x128xf32>
    %185 = vector.extract_strided_slice %184 {offsets = [0, 0], sizes = [8, 40], strides = [1, 1]} : vector<8x128xf32> to vector<8x40xf32>
    %186 = arith.truncf %185 : vector<8x40xf32> to vector<8x40xbf16>
    %c5_153 = arith.constant 5 : index
    %c3_154 = arith.constant 3 : index
    %c0_155 = arith.constant 0 : index
    %c0_156 = arith.constant 0 : index
    %187 = vector.load %arg2[%c5_153, %c3_154, %c0_155, %c0_156] : memref<8x4x40x128xbf16, #tpu.memory_space<vmem>>, vector<1x1x40x128xbf16>
    %188 = vector.shape_cast %187 : vector<1x1x40x128xbf16> to vector<40x128xbf16>
    %cst_157 = arith.constant dense<0.000000e+00> : vector<8x128xf32>
    %189 = tpu.matmul %186, %188, %cst_157 {dimension_numbers = #tpu.dot_dimension_numbers<[1], [0], [0], [1], [0, 0, 1, 1], [], []>} : vector<8x40xbf16>, vector<40x128xbf16>, vector<8x128xf32> -> vector<8x128xf32>
    %cst_158 = arith.constant 0.000000e+00 : f32
    %190 = vector.broadcast %cst_158 : f32 to vector<8x128xf32>
    %191 = arith.subf %190, %189 : vector<8x128xf32>
    %192 = math.exp %191 : vector<8x128xf32>
    %cst_159 = arith.constant 1.000000e+00 : f32
    %193 = vector.broadcast %cst_159 : f32 to vector<8x128xf32>
    %194 = arith.addf %193, %192 : vector<8x128xf32>
    %195 = tpu.reciprocal %194 {approx = true} : vector<8x128xf32> -> vector<8x128xf32>
    %c5_160 = arith.constant 5 : index
    %c0_161 = arith.constant 0 : index
    %c0_162 = arith.constant 0 : index
    %196 = vector.load %arg3[%c5_160, %c0_161, %c0_162] : memref<8x8x128xf32, #tpu.memory_space<vmem>>, vector<1x8x128xf32>
    %197 = vector.shape_cast %196 : vector<1x8x128xf32> to vector<8x128xf32>
    %198 = vector.shape_cast %195 : vector<8x128xf32> to vector<1x8x128xf32>
    tpu.vector_store %arg3[%c5_160, %c0_161, %c0_162], %198 {strides = array<i32>} : memref<8x8x128xf32, #tpu.memory_space<vmem>>, vector<1x8x128xf32>,
    %c6 = arith.constant 6 : index
    %c0_163 = arith.constant 0 : index
    %c0_164 = arith.constant 0 : index
    %c0_165 = arith.constant 0 : index
    %199 = vector.load %arg2[%c6, %c0_163, %c0_164, %c0_165] : memref<8x4x40x128xbf16, #tpu.memory_space<vmem>>, vector<1x1x40x128xbf16>
    %200 = vector.shape_cast %199 : vector<1x1x40x128xbf16> to vector<40x128xbf16>
    %cst_166 = arith.constant dense<0.000000e+00> : vector<8x128xf32>
    %201 = tpu.matmul %0, %200, %cst_166 {dimension_numbers = #tpu.dot_dimension_numbers<[1], [0], [0], [1], [0, 0, 1, 1], [], []>} : vector<8x40xbf16>, vector<40x128xbf16>, vector<8x128xf32> -> vector<8x128xf32>
    %cst_167 = arith.constant 0.000000e+00 : f32
    %202 = vector.broadcast %cst_167 : f32 to vector<8x128xf32>
    %203 = arith.maximumf %201, %202 : vector<8x128xf32>
    %204 = vector.extract_strided_slice %203 {offsets = [0, 0], sizes = [8, 40], strides = [1, 1]} : vector<8x128xf32> to vector<8x40xf32>
    %205 = arith.truncf %204 : vector<8x40xf32> to vector<8x40xbf16>
    %c6_168 = arith.constant 6 : index
    %c1_169 = arith.constant 1 : index
    %c0_170 = arith.constant 0 : index
    %c0_171 = arith.constant 0 : index
    %206 = vector.load %arg2[%c6_168, %c1_169, %c0_170, %c0_171] : memref<8x4x40x128xbf16, #tpu.memory_space<vmem>>, vector<1x1x40x128xbf16>
    %207 = vector.shape_cast %206 : vector<1x1x40x128xbf16> to vector<40x128xbf16>
    %cst_172 = arith.constant dense<0.000000e+00> : vector<8x128xf32>
    %208 = tpu.matmul %205, %207, %cst_172 {dimension_numbers = #tpu.dot_dimension_numbers<[1], [0], [0], [1], [0, 0, 1, 1], [], []>} : vector<8x40xbf16>, vector<40x128xbf16>, vector<8x128xf32> -> vector<8x128xf32>
    %cst_173 = arith.constant 0.000000e+00 : f32
    %209 = vector.broadcast %cst_173 : f32 to vector<8x128xf32>
    %210 = arith.maximumf %208, %209 : vector<8x128xf32>
    %211 = vector.extract_strided_slice %210 {offsets = [0, 0], sizes = [8, 40], strides = [1, 1]} : vector<8x128xf32> to vector<8x40xf32>
    %212 = arith.truncf %211 : vector<8x40xf32> to vector<8x40xbf16>
    %c6_174 = arith.constant 6 : index
    %c2_175 = arith.constant 2 : index
    %c0_176 = arith.constant 0 : index
    %c0_177 = arith.constant 0 : index
    %213 = vector.load %arg2[%c6_174, %c2_175, %c0_176, %c0_177] : memref<8x4x40x128xbf16, #tpu.memory_space<vmem>>, vector<1x1x40x128xbf16>
    %214 = vector.shape_cast %213 : vector<1x1x40x128xbf16> to vector<40x128xbf16>
    %cst_178 = arith.constant dense<0.000000e+00> : vector<8x128xf32>
    %215 = tpu.matmul %212, %214, %cst_178 {dimension_numbers = #tpu.dot_dimension_numbers<[1], [0], [0], [1], [0, 0, 1, 1], [], []>} : vector<8x40xbf16>, vector<40x128xbf16>, vector<8x128xf32> -> vector<8x128xf32>
    %cst_179 = arith.constant 0.000000e+00 : f32
    %216 = vector.broadcast %cst_179 : f32 to vector<8x128xf32>
    %217 = arith.maximumf %215, %216 : vector<8x128xf32>
    %218 = vector.extract_strided_slice %217 {offsets = [0, 0], sizes = [8, 40], strides = [1, 1]} : vector<8x128xf32> to vector<8x40xf32>
    %219 = arith.truncf %218 : vector<8x40xf32> to vector<8x40xbf16>
    %c6_180 = arith.constant 6 : index
    %c3_181 = arith.constant 3 : index
    %c0_182 = arith.constant 0 : index
    %c0_183 = arith.constant 0 : index
    %220 = vector.load %arg2[%c6_180, %c3_181, %c0_182, %c0_183] : memref<8x4x40x128xbf16, #tpu.memory_space<vmem>>, vector<1x1x40x128xbf16>
    %221 = vector.shape_cast %220 : vector<1x1x40x128xbf16> to vector<40x128xbf16>
    %cst_184 = arith.constant dense<0.000000e+00> : vector<8x128xf32>
    %222 = tpu.matmul %219, %221, %cst_184 {dimension_numbers = #tpu.dot_dimension_numbers<[1], [0], [0], [1], [0, 0, 1, 1], [], []>} : vector<8x40xbf16>, vector<40x128xbf16>, vector<8x128xf32> -> vector<8x128xf32>
    %cst_185 = arith.constant 0.000000e+00 : f32
    %223 = vector.broadcast %cst_185 : f32 to vector<8x128xf32>
    %224 = arith.subf %223, %222 : vector<8x128xf32>
    %225 = math.exp %224 : vector<8x128xf32>
    %cst_186 = arith.constant 1.000000e+00 : f32
    %226 = vector.broadcast %cst_186 : f32 to vector<8x128xf32>
    %227 = arith.addf %226, %225 : vector<8x128xf32>
    %228 = tpu.reciprocal %227 {approx = true} : vector<8x128xf32> -> vector<8x128xf32>
    %c6_187 = arith.constant 6 : index
    %c0_188 = arith.constant 0 : index
    %c0_189 = arith.constant 0 : index
    %229 = vector.load %arg3[%c6_187, %c0_188, %c0_189] : memref<8x8x128xf32, #tpu.memory_space<vmem>>, vector<1x8x128xf32>
    %230 = vector.shape_cast %229 : vector<1x8x128xf32> to vector<8x128xf32>
    %231 = vector.shape_cast %228 : vector<8x128xf32> to vector<1x8x128xf32>
    tpu.vector_store %arg3[%c6_187, %c0_188, %c0_189], %231 {strides = array<i32>} : memref<8x8x128xf32, #tpu.memory_space<vmem>>, vector<1x8x128xf32>,
    %c7 = arith.constant 7 : index
    %c0_190 = arith.constant 0 : index
    %c0_191 = arith.constant 0 : index
    %c0_192 = arith.constant 0 : index
    %232 = vector.load %arg2[%c7, %c0_190, %c0_191, %c0_192] : memref<8x4x40x128xbf16, #tpu.memory_space<vmem>>, vector<1x1x40x128xbf16>
    %233 = vector.shape_cast %232 : vector<1x1x40x128xbf16> to vector<40x128xbf16>
    %cst_193 = arith.constant dense<0.000000e+00> : vector<8x128xf32>
    %234 = tpu.matmul %0, %233, %cst_193 {dimension_numbers = #tpu.dot_dimension_numbers<[1], [0], [0], [1], [0, 0, 1, 1], [], []>} : vector<8x40xbf16>, vector<40x128xbf16>, vector<8x128xf32> -> vector<8x128xf32>
    %cst_194 = arith.constant 0.000000e+00 : f32
    %235 = vector.broadcast %cst_194 : f32 to vector<8x128xf32>
    %236 = arith.maximumf %234, %235 : vector<8x128xf32>
    %237 = vector.extract_strided_slice %236 {offsets = [0, 0], sizes = [8, 40], strides = [1, 1]} : vector<8x128xf32> to vector<8x40xf32>
    %238 = arith.truncf %237 : vector<8x40xf32> to vector<8x40xbf16>
    %c7_195 = arith.constant 7 : index
    %c1_196 = arith.constant 1 : index
    %c0_197 = arith.constant 0 : index
    %c0_198 = arith.constant 0 : index
    %239 = vector.load %arg2[%c7_195, %c1_196, %c0_197, %c0_198] : memref<8x4x40x128xbf16, #tpu.memory_space<vmem>>, vector<1x1x40x128xbf16>
    %240 = vector.shape_cast %239 : vector<1x1x40x128xbf16> to vector<40x128xbf16>
    %cst_199 = arith.constant dense<0.000000e+00> : vector<8x128xf32>
    %241 = tpu.matmul %238, %240, %cst_199 {dimension_numbers = #tpu.dot_dimension_numbers<[1], [0], [0], [1], [0, 0, 1, 1], [], []>} : vector<8x40xbf16>, vector<40x128xbf16>, vector<8x128xf32> -> vector<8x128xf32>
    %cst_200 = arith.constant 0.000000e+00 : f32
    %242 = vector.broadcast %cst_200 : f32 to vector<8x128xf32>
    %243 = arith.maximumf %241, %242 : vector<8x128xf32>
    %244 = vector.extract_strided_slice %243 {offsets = [0, 0], sizes = [8, 40], strides = [1, 1]} : vector<8x128xf32> to vector<8x40xf32>
    %245 = arith.truncf %244 : vector<8x40xf32> to vector<8x40xbf16>
    %c7_201 = arith.constant 7 : index
    %c2_202 = arith.constant 2 : index
    %c0_203 = arith.constant 0 : index
    %c0_204 = arith.constant 0 : index
    %246 = vector.load %arg2[%c7_201, %c2_202, %c0_203, %c0_204] : memref<8x4x40x128xbf16, #tpu.memory_space<vmem>>, vector<1x1x40x128xbf16>
    %247 = vector.shape_cast %246 : vector<1x1x40x128xbf16> to vector<40x128xbf16>
    %cst_205 = arith.constant dense<0.000000e+00> : vector<8x128xf32>
    %248 = tpu.matmul %245, %247, %cst_205 {dimension_numbers = #tpu.dot_dimension_numbers<[1], [0], [0], [1], [0, 0, 1, 1], [], []>} : vector<8x40xbf16>, vector<40x128xbf16>, vector<8x128xf32> -> vector<8x128xf32>
    %cst_206 = arith.constant 0.000000e+00 : f32
    %249 = vector.broadcast %cst_206 : f32 to vector<8x128xf32>
    %250 = arith.maximumf %248, %249 : vector<8x128xf32>
    %251 = vector.extract_strided_slice %250 {offsets = [0, 0], sizes = [8, 40], strides = [1, 1]} : vector<8x128xf32> to vector<8x40xf32>
    %252 = arith.truncf %251 : vector<8x40xf32> to vector<8x40xbf16>
    %c7_207 = arith.constant 7 : index
    %c3_208 = arith.constant 3 : index
    %c0_209 = arith.constant 0 : index
    %c0_210 = arith.constant 0 : index
    %253 = vector.load %arg2[%c7_207, %c3_208, %c0_209, %c0_210] : memref<8x4x40x128xbf16, #tpu.memory_space<vmem>>, vector<1x1x40x128xbf16>
    %254 = vector.shape_cast %253 : vector<1x1x40x128xbf16> to vector<40x128xbf16>
    %cst_211 = arith.constant dense<0.000000e+00> : vector<8x128xf32>
    %255 = tpu.matmul %252, %254, %cst_211 {dimension_numbers = #tpu.dot_dimension_numbers<[1], [0], [0], [1], [0, 0, 1, 1], [], []>} : vector<8x40xbf16>, vector<40x128xbf16>, vector<8x128xf32> -> vector<8x128xf32>
    %cst_212 = arith.constant 0.000000e+00 : f32
    %256 = vector.broadcast %cst_212 : f32 to vector<8x128xf32>
    %257 = arith.subf %256, %255 : vector<8x128xf32>
    %258 = math.exp %257 : vector<8x128xf32>
    %cst_213 = arith.constant 1.000000e+00 : f32
    %259 = vector.broadcast %cst_213 : f32 to vector<8x128xf32>
    %260 = arith.addf %259, %258 : vector<8x128xf32>
    %261 = tpu.reciprocal %260 {approx = true} : vector<8x128xf32> -> vector<8x128xf32>
    %c7_214 = arith.constant 7 : index
    %c0_215 = arith.constant 0 : index
    %c0_216 = arith.constant 0 : index
    %262 = vector.load %arg3[%c7_214, %c0_215, %c0_216] : memref<8x8x128xf32, #tpu.memory_space<vmem>>, vector<1x8x128xf32>
    %263 = vector.shape_cast %262 : vector<1x8x128xf32> to vector<8x128xf32>
    %264 = vector.shape_cast %261 : vector<8x128xf32> to vector<1x8x128xf32>
    tpu.vector_store %arg3[%c7_214, %c0_215, %c0_216], %264 {strides = array<i32>} : memref<8x8x128xf32, #tpu.memory_space<vmem>>, vector<1x8x128xf32>,
    return
  }
  func.func @transform_0(%arg0: i32) -> (i32, i32) {
    %c0_i32 = arith.constant 0 : i32
    %c0_i32_0 = arith.constant 0 : i32
    %c0_i32_1 = arith.constant 0 : i32
    return %c0_i32, %c0_i32_0 : i32, i32
  }
  func.func @transform_1(%arg0: i32) -> (i32, i32, i32, i32) {
    %c0_i32 = arith.constant 0 : i32
    %c0_i32_0 = arith.constant 0 : i32
    %c0_i32_1 = arith.constant 0 : i32
    %c0_i32_2 = arith.constant 0 : i32
    return %arg0, %c0_i32, %c0_i32_0, %c0_i32_1 : i32, i32, i32, i32
  }
  func.func @transform_2(%arg0: i32) -> (i32, i32, i32) {
    %c0_i32 = arith.constant 0 : i32
    %c0_i32_0 = arith.constant 0 : i32
    %c0_i32_1 = arith.constant 0 : i32
    return %arg0, %c0_i32, %c0_i32_0 : i32, i32, i32
  }
}

</mosaic_0001>

<llo_original>
// kernel: tpu_custom_call.1
$region0: #{tpu_custom_call.1}
  #allocation0 [shape = 'u32[]', space=smem, size = 0x4, offset = 0x4, fixed_abs, tag = 'smem constant byte address 0x4 - core index']
  #allocation1 [shape = 'u32[144,128]{1,0:T(1,128)}', space=vmem, size = 0x12000, scoped, tag = 'internal scratch']
  %s0 = inlined_call_operand.hbm [shape: bf16[8,40], index: 0, kind: input, shape index: {}]
  %s1 = inlined_call_operand.hbm [shape: bf16[16,4,40,128], index: 1, kind: input, shape index: {}]
  %s2 = inlined_call_operand.hbm [shape: f32[16,8,128], index: 2, kind: output, shape index: {}]
  %s3 = sld [smem:[#allocation0]]
  $region49: #{tpu_custom_call.1} parent=0
    _
  %s5 = ssub.s32 1, %s3
  %s6 = scalar_select 0, %s5, %s3
  $region1: #{tpu_custom_call.1} parent=0
    #allocation2 [shape = 'u8[2048]{0}', space=vmem, size = 0x800, scoped, tag = 'input window, operand 0, single buffered']
    #allocation3 [shape = 's32[2]{0}', space=sflag, size = 0x8, scoped, tag = 'scoped memory for tpu_custom_call.1']
    #allocation4 [shape = 's32[2]{0}', space=sflag, size = 0x8, scoped, tag = 'scoped memory for tpu_custom_call.1']
    #allocation5 [shape = 'u8[655360]{0}', space=vmem, size = 0xa0000, scoped, tag = 'input window, operand 1']
    #allocation6 [shape = 's32[2]{0}', space=sflag, size = 0x8, scoped, tag = 'scoped memory for tpu_custom_call.1']
    #allocation7 [shape = 'u8[65536]{0}', space=vmem, size = 0x10000, scoped, tag = 'output window, operand 0']
    %7 = vsyncpa [#allocation3], 0
    %8 = vsyncpa [#allocation6], 0
    %s9 = scalar_lea.sflag [#allocation6], 1
    %10 = vsyncpa %s9, 0
    %11 = vsyncpa [#allocation4], 0
    %s12 = scalar_lea.sflag [#allocation4], 1
    %13 = vsyncpa %s12, 0
    loop: start=0, step=1, limit=4
    $region2: #{tpu_custom_call.1} parent=1 // loop_pre_header
      _
    $region3: #{tpu_custom_call.1} parent=1 // loop_header
      %s15 = sphi 0, %s19
      %p16 = scmp.ge.s32.totalorder %s15, 4
      %s23 = sphi 0, %s23
      %s25 = sphi 0, %s23
      %s26 = sphi 0, %s25
      %s40 = sphi 0, %s26
      %s46 = sphi 0, %s48
      %s49 = sphi 0, %s46
      %s50 = sphi 0, %s49
      %s66 = sphi 0, %s50
      %s72 = sphi 0, %s74
      %s75 = sphi 0, %s72
      %s76 = sphi 0, %s75
      %s92 = sphi 0, %s76
    $region4: #{tpu_custom_call.1} parent=1 // loop_header_branch
      %18 = sbr.rel (%p16) target = $region8
    $region5: #{tpu_custom_call.1} parent=1 // loop_body
      %s20 = ssub.s32 %s15, 1
      %s21 = ssub.s32 %s15, 2
      %s22 = sadd.s32 %s15, 1
      %s24 = sadd.s32 %s23, 1
      %p27 = scmp.eq.s32.totalorder %s15, 1
      %p28 = scmp.ne.s32.totalorder %s23, %s25
      %p29 = scmp.eq.s32.totalorder %s15, 0
      %p30 = por %p28, %p29
      %p31 = scmp.ne.s32.totalorder %s23, %s25
      %p32 = scmp.eq.s32.totalorder %s20, 1
      %p33 = por %p31, %p32
      %p34 = scmp.ne.s32.totalorder %s25, %s26
      %p35 = scmp.eq.s32.totalorder %s20, 0
      %p36 = por %p34, %p35
      %p37 = scmp.ne.s32.totalorder %s25, %s26
      %p38 = scmp.eq.s32.totalorder %s21, 1
      %p39 = por %p37, %p38
      %p41 = scmp.ne.s32.totalorder %s26, %s40
      %p42 = scmp.eq.s32.totalorder %s21, 0
      %p43 = por %p41, %p42
      %s44 = ssub.s32 %s15, %s22
      %p45 = scmp.eq.s32.totalorder %s44, 0
      %s47 = sadd.s32 %s46, 1
      %s48 = scalar_select %p45, %s46, %s47
      %p51 = pneg %p45
      %p52 = scmp.eq.s32.totalorder %s15, 1
      %p53 = por %p51, %p52
      %p54 = scmp.ne.s32.totalorder %s46, %s49
      %p55 = scmp.eq.s32.totalorder %s15, 0
      %p56 = por %p54, %p55
      %p57 = scmp.ne.s32.totalorder %s46, %s49
      %p58 = scmp.eq.s32.totalorder %s20, 1
      %p59 = por %p57, %p58
      %p60 = scmp.ne.s32.totalorder %s49, %s50
      %p61 = scmp.eq.s32.totalorder %s20, 0
      %p62 = por %p60, %p61
      %p63 = scmp.ne.s32.totalorder %s49, %s50
      %p64 = scmp.eq.s32.totalorder %s21, 1
      %p65 = por %p63, %p64
      %p67 = scmp.ne.s32.totalorder %s50, %s66
      %p68 = scmp.eq.s32.totalorder %s21, 0
      %p69 = por %p67, %p68
      %s70 = ssub.s32 %s15, %s22
      %p71 = scmp.eq.s32.totalorder %s70, 0
      %s73 = sadd.s32 %s72, 1
      %s74 = scalar_select %p71, %s72, %s73
      %p77 = pneg %p71
      %p78 = scmp.eq.s32.totalorder %s15, 1
      %p79 = por %p77, %p78
      %p80 = scmp.ne.s32.totalorder %s72, %s75
      %p81 = scmp.eq.s32.totalorder %s15, 0
      %p82 = por %p80, %p81
      %p83 = scmp.ne.s32.totalorder %s72, %s75
      %p84 = scmp.eq.s32.totalorder %s20, 1
      %p85 = por %p83, %p84
      %p86 = scmp.ne.s32.totalorder %s75, %s76
      %p87 = scmp.eq.s32.totalorder %s20, 0
      %p88 = por %p86, %p87
      %p89 = scmp.ne.s32.totalorder %s75, %s76
      %p90 = scmp.eq.s32.totalorder %s21, 1
      %p91 = por %p89, %p90
      %p93 = scmp.ne.s32.totalorder %s76, %s92
      %p94 = scmp.eq.s32.totalorder %s21, 0
      %p95 = por %p93, %p94
      %p96 = scmp.le.s32.totalorder 1, %s15
      %p97 = scmp.lt.s32.totalorder %s15, 3
      %p98 = pnand %p96, %p97
      %p99 = pneg %p98
      // Predicated region
      $region9: #{tpu_custom_call.1} parent=5 // pred_check
        _
      $region10: #{tpu_custom_call.1} parent=5 // pred_check_branch
        %101 = sbr.rel (%p98) target = $region12
      $region11: #{tpu_custom_call.1} parent=5 // pred_region
        %s102 = ssub.s32 %s15, 1
        // Predicated region
        $region13: #{tpu_custom_call.1} parent=11 // pred_check
          %p103 = pneg %p36
        $region14: #{tpu_custom_call.1} parent=11 // pred_check_branch
          %105 = sbr.rel (%p103) target = $region16
        $region15: #{tpu_custom_call.1} parent=11 // pred_region
          %s107 = ssub.s32 64, 64
          %108 = vsyncadd [#allocation3], %s107
          %s110 = sshll.u32 [#allocation2], 4
          %s111 = int_to_ptr.vmem [resolvable:$true] %s110
          %113 = dma.hbm_to_vmem [thread:$0]  %s0, 64, %s111, [#allocation3]
        $region16: #{tpu_custom_call.1} parent=11 // pred_fallthru
          _
      $region12: #{tpu_custom_call.1} parent=5 // pred_fallthru
        _
      %p114 = scmp.lt.s32.totalorder %s15, 2
      // Predicated region
      $region17: #{tpu_custom_call.1} parent=5 // pred_check
        %p115 = pneg %p114
      $region18: #{tpu_custom_call.1} parent=5 // pred_check_branch
        %117 = sbr.rel (%p115) target = $region20
      $region19: #{tpu_custom_call.1} parent=5 // pred_region
        // Predicated region
        $region21: #{tpu_custom_call.1} parent=19 // pred_check
          %p118 = pneg %p56
        $region22: #{tpu_custom_call.1} parent=19 // pred_check_branch
          %120 = sbr.rel (%p118) target = $region24
        $region23: #{tpu_custom_call.1} parent=19 // pred_region
          %s121 = sand.u32 %s46, 1
          %s122 = scalar_lea.sflag [#allocation6], %s121
          %s123 = sand.u32 %s46, 1
          %s124 = smul.addr %s123, 640
          %s125 = scalar_lea.vmem [#allocation5], %s124
          %s126 = smul.u32 8, %s15
          %s128 = ssub.s32 10240, 10240
          %129 = vsyncadd %s122, %s128
          %s130 = smul.addr %s126, 20
          %s131 = smul.addr %s130, 64
          %s132 = scalar_lea.hbm %s1, %s131
          %s133 = sshll.u32 %s125, 4
          %s134 = int_to_ptr.vmem [resolvable:$true] %s133
          %139 = dma.hbm_to_vmem [thread:$0]  %s132, 10240, %s134, %s122, 64, 64, 4
        $region24: #{tpu_custom_call.1} parent=19 // pred_fallthru
          _
      $region20: #{tpu_custom_call.1} parent=5 // pred_fallthru
        _
      %p140 = scmp.le.s32.totalorder 1, %s15
      %p141 = scmp.lt.s32.totalorder %s15, 3
      %p142 = pnand %p140, %p141
      %p143 = pneg %p142
      // Predicated region
      $region25: #{tpu_custom_call.1} parent=5 // pred_check
        _
      $region26: #{tpu_custom_call.1} parent=5 // pred_check_branch
        %145 = sbr.rel (%p142) target = $region28
      $region27: #{tpu_custom_call.1} parent=5 // pred_region
        %s146 = ssub.s32 %s15, 1
        // Predicated region
        $region29: #{tpu_custom_call.1} parent=27 // pred_check
          %p147 = pneg %p36
        $region30: #{tpu_custom_call.1} parent=27 // pred_check_branch
          %149 = sbr.rel (%p147) target = $region32
        $region31: #{tpu_custom_call.1} parent=27 // pred_region
          %150 = dma.done [#allocation3], 64
        $region32: #{tpu_custom_call.1} parent=27 // pred_fallthru
          _
        %s151 = sand.u32 %s49, 1
        %s152 = scalar_lea.sflag [#allocation6], %s151
        %s153 = sand.u32 %s49, 1
        %s154 = smul.addr %s153, 640
        %s155 = scalar_lea.vmem [#allocation5], %s154
        // Predicated region
        $region33: #{tpu_custom_call.1} parent=27 // pred_check
          %p156 = pneg %p62
        $region34: #{tpu_custom_call.1} parent=27 // pred_check_branch
          %158 = sbr.rel (%p156) target = $region36
        $region35: #{tpu_custom_call.1} parent=27 // pred_region
          %159 = dma.done %s152, 10240
        $region36: #{tpu_custom_call.1} parent=27 // pred_fallthru
          _
        %p160 = pneg %p36
        %p161 = pneg %p33
        %s162 = sand.u32 %s49, 1
        %s163 = scalar_lea.sflag [#allocation6], %s162
        %s164 = sand.u32 %s49, 1
        %s165 = smul.addr %s164, 640
        %s166 = scalar_lea.vmem [#allocation5], %s165
        %p167 = pneg %p62
        %p168 = pneg %p59
        %p169 = pneg %p88
        %p170 = pneg %p85
        %s171 = sand.u32 %s75, 1
        %s172 = scalar_lea.sflag [#allocation4], %s171
        %s173 = sand.u32 %s75, 1
        %s174 = smul.addr %s173, 64
        %s175 = scalar_lea.vmem [#allocation7], %s174
        %s176 = smul.u32 8, %s20
        %s177 = smul.u32 8, %s20
        %v179 = vld [vmem:[#allocation2] sm:$0xf]
        %v180 = vld [vmem:[%s155] sm:$0xf]
        %v181 = vld [vmem:[%s155 + $0x4] sm:$0xf]
        %v182 = vld [vmem:[%s155 + $0x8] sm:$0xf]
        %v183 = vld [vmem:[%s155 + $0xc] sm:$0xf]
        %v184 = vld [vmem:[%s155 + $0x10] sm:$0xf]
        %v190 = vunpack.c.l.b16 %v180
        %v191 = vunpack.c.l.b16 %v181
        %v192 = vunpack.c.l.b16 %v182
        %v193 = vunpack.c.l.b16 %v183
        %v194 = vunpack.c.l.b16 %v184
        %v195 = vpack.c.b16 %v191, %v190
        %v196 = vpack.c.b16 %v193, %v192
        %v197 = vpack.c.b16 %v194, %v194
        %vm200 = vcmask 326656
        %v202 = vsel %vm200, %v179, 0
        %vm204 = vcmask 1043456
        %v206 = vsel %vm204, %v197, 0
        %208 = vmatprep.subr.bf16.mxu0 0
        %209 = vmatpush1.bf16.msra.mxu0 %v195
        %210 = vmatprep.subr.bf16.mxu0 0
        %211 = vmatpush1.bf16.msra.mxu0 %v196
        %212 = vmatprep.subr.bf16.mxu0 0
        %213 = vmatpush1.bf16.msra.mxu0 %v206
        %214 = vmatprep.subr.bf16.mxu0 0
        %215 = vmatpush1.bf16.msra.mxu0 0
        %216 = vmatprep.subr.bf16.mxu0 0
        %217 = vmatpush1.bf16.msra.mxu0 0
        %218 = vmatprep.subr.bf16.mxu0 0
        %219 = vmatpush1.bf16.msra.mxu0 0
        %220 = vmatprep.subr.bf16.mxu0 0
        %221 = vmatpush1.bf16.msra.mxu0 0
        %222 = vmatprep.subr.bf16.mxu0 0
        %223 = vmatpush1.bf16.msra.mxu0 0
        %224 = vmatprep.subr.bf16.mxu0 0
        %225 = vmatpush1.bf16.msra.mxu0 0
        %226 = vmatprep.subr.bf16.mxu0 0
        %227 = vmatpush1.bf16.msra.mxu0 0
        %228 = vmatprep.subr.bf16.mxu0 0
        %229 = vmatpush1.bf16.msra.mxu0 0
        %230 = vmatprep.subr.bf16.mxu0 0
        %231 = vmatpush1.bf16.msra.mxu0 0
        %232 = vmatprep.subr.bf16.mxu0 0
        %233 = vmatpush1.bf16.msra.mxu0 0
        %234 = vmatprep.subr.bf16.mxu0 0
        %235 = vmatpush1.bf16.msra.mxu0 0
        %236 = vmatprep.subr.bf16.mxu0 0
        %237 = vmatpush1.bf16.msra.mxu0 0
        %238 = vmatprep.subr.bf16.mxu0 0
        %239 = vmatpush1.bf16.msra.mxu0 0
        %240 = vmatprep.mubr.bf16.mxu0 0
        %241 = vmatmul.mubr.bf16.gmra.mrb[0].mxu0 %v202
        %v242 = vpop.f32.mrb[0].mxu0
        %v243 = vadd.f32 0.0, %v242
        %v244 = vpop.f32.mrb[0].mxu0
        %v245 = vpop.f32.mrb[0].mxu0
        %v246 = vpop.f32.mrb[0].mxu0
        %247 = vdwg.mxu0
        %v248 = vmax.f32 %v243, 0.0
        %v249 = vpack.c.bf16 %v248, %v248
        %s250 = scalar_lea.vmem %s155, 20 [#allocation5]
        %v251 = vld [vmem:[%s250] sm:$0xf]
        %v252 = vld [vmem:[%s250 + $0x4] sm:$0xf]
        %v253 = vld [vmem:[%s250 + $0x8] sm:$0xf]
        %v254 = vld [vmem:[%s250 + $0xc] sm:$0xf]
        %v255 = vld [vmem:[%s250 + $0x10] sm:$0xf]
        %v261 = vunpack.c.l.b16 %v251
        %v262 = vunpack.c.l.b16 %v252
        %v263 = vunpack.c.l.b16 %v253
        %v264 = vunpack.c.l.b16 %v254
        %v265 = vunpack.c.l.b16 %v255
        %v266 = vpack.c.b16 %v262, %v261
        %v267 = vpack.c.b16 %v264, %v263
        %v268 = vpack.c.b16 %v265, %v265
        %v272 = vsel %vm200, %v249, 0
        %v275 = vsel %vm204, %v268, 0
        %277 = vmatprep.subr.bf16.mxu0 0
        %278 = vmatpush1.bf16.msra.mxu0 %v266
        %279 = vmatprep.subr.bf16.mxu0 0
        %280 = vmatpush1.bf16.msra.mxu0 %v267
        %281 = vmatprep.subr.bf16.mxu0 0
        %282 = vmatpush1.bf16.msra.mxu0 %v275
        %283 = vmatprep.subr.bf16.mxu0 0
        %284 = vmatpush1.bf16.msra.mxu0 0
        %285 = vmatprep.subr.bf16.mxu0 0
        %286 = vmatpush1.bf16.msra.mxu0 0
        %287 = vmatprep.subr.bf16.mxu0 0
        %288 = vmatpush1.bf16.msra.mxu0 0
        %289 = vmatprep.subr.bf16.mxu0 0
        %290 = vmatpush1.bf16.msra.mxu0 0
        %291 = vmatprep.subr.bf16.mxu0 0
        %292 = vmatpush1.bf16.msra.mxu0 0
        %293 = vmatprep.subr.bf16.mxu0 0
        %294 = vmatpush1.bf16.msra.mxu0 0
        %295 = vmatprep.subr.bf16.mxu0 0
        %296 = vmatpush1.bf16.msra.mxu0 0
        %297 = vmatprep.subr.bf16.mxu0 0
        %298 = vmatpush1.bf16.msra.mxu0 0
        %299 = vmatprep.subr.bf16.mxu0 0
        %300 = vmatpush1.bf16.msra.mxu0 0
        %301 = vmatprep.subr.bf16.mxu0 0
        %302 = vmatpush1.bf16.msra.mxu0 0
        %303 = vmatprep.subr.bf16.mxu0 0
        %304 = vmatpush1.bf16.msra.mxu0 0
        %305 = vmatprep.subr.bf16.mxu0 0
        %306 = vmatpush1.bf16.msra.mxu0 0
        %307 = vmatprep.subr.bf16.mxu0 0
        %308 = vmatpush1.bf16.msra.mxu0 0
        %309 = vmatprep.mubr.bf16.mxu0 0
        %310 = vmatmul.mubr.bf16.gmra.mrb[0].mxu0 %v272
        %v311 = vpop.f32.mrb[0].mxu0
        %v312 = vadd.f32 0.0, %v311
        %v313 = vpop.f32.mrb[0].mxu0
        %v314 = vpop.f32.mrb[0].mxu0
        %v315 = vpop.f32.mrb[0].mxu0
        %316 = vdwg.mxu0
        %v317 = vmax.f32 %v312, 0.0
        %v318 = vpack.c.bf16 %v317, %v317
        %s319 = scalar_lea.vmem %s155, 40 [#allocation5]
        %v320 = vld [vmem:[%s319] sm:$0xf]
        %v321 = vld [vmem:[%s319 + $0x4] sm:$0xf]
        %v322 = vld [vmem:[%s319 + $0x8] sm:$0xf]
        %v323 = vld [vmem:[%s319 + $0xc] sm:$0xf]
        %v324 = vld [vmem:[%s319 + $0x10] sm:$0xf]
        %v330 = vunpack.c.l.b16 %v320
        %v331 = vunpack.c.l.b16 %v321
        %v332 = vunpack.c.l.b16 %v322
        %v333 = vunpack.c.l.b16 %v323
        %v334 = vunpack.c.l.b16 %v324
        %v335 = vpack.c.b16 %v331, %v330
        %v336 = vpack.c.b16 %v333, %v332
        %v337 = vpack.c.b16 %v334, %v334
        %v341 = vsel %vm200, %v318, 0
        %v344 = vsel %vm204, %v337, 0
        %346 = vmatprep.subr.bf16.mxu0 0
        %347 = vmatpush1.bf16.msra.mxu0 %v335
        %348 = vmatprep.subr.bf16.mxu0 0
        %349 = vmatpush1.bf16.msra.mxu0 %v336
        %350 = vmatprep.subr.bf16.mxu0 0
        %351 = vmatpush1.bf16.msra.mxu0 %v344
        %352 = vmatprep.subr.bf16.mxu0 0
        %353 = vmatpush1.bf16.msra.mxu0 0
        %354 = vmatprep.subr.bf16.mxu0 0
        %355 = vmatpush1.bf16.msra.mxu0 0
        %356 = vmatprep.subr.bf16.mxu0 0
        %357 = vmatpush1.bf16.msra.mxu0 0
        %358 = vmatprep.subr.bf16.mxu0 0
        %359 = vmatpush1.bf16.msra.mxu0 0
        %360 = vmatprep.subr.bf16.mxu0 0
        %361 = vmatpush1.bf16.msra.mxu0 0
        %362 = vmatprep.subr.bf16.mxu0 0
        %363 = vmatpush1.bf16.msra.mxu0 0
        %364 = vmatprep.subr.bf16.mxu0 0
        %365 = vmatpush1.bf16.msra.mxu0 0
        %366 = vmatprep.subr.bf16.mxu0 0
        %367 = vmatpush1.bf16.msra.mxu0 0
        %368 = vmatprep.subr.bf16.mxu0 0
        %369 = vmatpush1.bf16.msra.mxu0 0
        %370 = vmatprep.subr.bf16.mxu0 0
        %371 = vmatpush1.bf16.msra.mxu0 0
        %372 = vmatprep.subr.bf16.mxu0 0
        %373 = vmatpush1.bf16.msra.mxu0 0
        %374 = vmatprep.subr.bf16.mxu0 0
        %375 = vmatpush1.bf16.msra.mxu0 0
        %376 = vmatprep.subr.bf16.mxu0 0
        %377 = vmatpush1.bf16.msra.mxu0 0
        %378 = vmatprep.mubr.bf16.mxu0 0
        %379 = vmatmul.mubr.bf16.gmra.mrb[0].mxu0 %v341
        %v380 = vpop.f32.mrb[0].mxu0
        %v381 = vadd.f32 0.0, %v380
        %v382 = vpop.f32.mrb[0].mxu0
        %v383 = vpop.f32.mrb[0].mxu0
        %v384 = vpop.f32.mrb[0].mxu0
        %385 = vdwg.mxu0
        %v386 = vmax.f32 %v381, 0.0
        %v387 = vpack.c.bf16 %v386, %v386
        %s388 = scalar_lea.vmem %s155, 60 [#allocation5]
        %v389 = vld [vmem:[%s388] sm:$0xf]
        %v390 = vld [vmem:[%s388 + $0x4] sm:$0xf]
        %v391 = vld [vmem:[%s388 + $0x8] sm:$0xf]
        %v392 = vld [vmem:[%s388 + $0xc] sm:$0xf]
        %v393 = vld [vmem:[%s388 + $0x10] sm:$0xf]
        %v399 = vunpack.c.l.b16 %v389
        %v400 = vunpack.c.l.b16 %v390
        %v401 = vunpack.c.l.b16 %v391
        %v402 = vunpack.c.l.b16 %v392
        %v403 = vunpack.c.l.b16 %v393
        %v404 = vpack.c.b16 %v400, %v399
        %v405 = vpack.c.b16 %v402, %v401
        %v406 = vpack.c.b16 %v403, %v403
        %v410 = vsel %vm200, %v387, 0
        %v413 = vsel %vm204, %v406, 0
        %415 = vmatprep.subr.bf16.mxu0 0
        %416 = vmatpush1.bf16.msra.mxu0 %v404
        %417 = vmatprep.subr.bf16.mxu0 0
        %418 = vmatpush1.bf16.msra.mxu0 %v405
        %419 = vmatprep.subr.bf16.mxu0 0
        %420 = vmatpush1.bf16.msra.mxu0 %v413
        %421 = vmatprep.subr.bf16.mxu0 0
        %422 = vmatpush1.bf16.msra.mxu0 0
        %423 = vmatprep.subr.bf16.mxu0 0
        %424 = vmatpush1.bf16.msra.mxu0 0
        %425 = vmatprep.subr.bf16.mxu0 0
        %426 = vmatpush1.bf16.msra.mxu0 0
        %427 = vmatprep.subr.bf16.mxu0 0
        %428 = vmatpush1.bf16.msra.mxu0 0
        %429 = vmatprep.subr.bf16.mxu0 0
        %430 = vmatpush1.bf16.msra.mxu0 0
        %431 = vmatprep.subr.bf16.mxu0 0
        %432 = vmatpush1.bf16.msra.mxu0 0
        %433 = vmatprep.subr.bf16.mxu0 0
        %434 = vmatpush1.bf16.msra.mxu0 0
        %435 = vmatprep.subr.bf16.mxu0 0
        %436 = vmatpush1.bf16.msra.mxu0 0
        %437 = vmatprep.subr.bf16.mxu0 0
        %438 = vmatpush1.bf16.msra.mxu0 0
        %439 = vmatprep.subr.bf16.mxu0 0
        %440 = vmatpush1.bf16.msra.mxu0 0
        %441 = vmatprep.subr.bf16.mxu0 0
        %442 = vmatpush1.bf16.msra.mxu0 0
        %443 = vmatprep.subr.bf16.mxu0 0
        %444 = vmatpush1.bf16.msra.mxu0 0
        %445 = vmatprep.subr.bf16.mxu0 0
        %446 = vmatpush1.bf16.msra.mxu0 0
        %447 = vmatprep.mubr.bf16.mxu0 0
        %448 = vmatmul.mubr.bf16.gmra.mrb[0].mxu0 %v410
        %v449 = vpop.f32.mrb[0].mxu0
        %v450 = vadd.f32 0.0, %v449
        %v451 = vpop.f32.mrb[0].mxu0
        %v452 = vpop.f32.mrb[0].mxu0
        %v453 = vpop.f32.mrb[0].mxu0
        %454 = vdwg.mxu0
        %v455 = vsub.f32 0.0, %v450
        %v456 = vmul.f32 %v455, 1.442695
        %v457 = vpow.pop %v456
        %v458 = vadd.f32 %v457, 1.0
        %v459 = vrcp.pop %v458
        %460 = vst [vmem:[%s175] sm:$0xff] %v459
        %s461 = scalar_lea.vmem %s155, 80 [#allocation5]
        %v462 = vld [vmem:[%s461] sm:$0xf]
        %v463 = vld [vmem:[%s461 + $0x4] sm:$0xf]
        %v464 = vld [vmem:[%s461 + $0x8] sm:$0xf]
        %v465 = vld [vmem:[%s461 + $0xc] sm:$0xf]
        %v466 = vld [vmem:[%s461 + $0x10] sm:$0xf]
        %v472 = vunpack.c.l.b16 %v462
        %v473 = vunpack.c.l.b16 %v463
        %v474 = vunpack.c.l.b16 %v464
        %v475 = vunpack.c.l.b16 %v465
        %v476 = vunpack.c.l.b16 %v466
        %v477 = vpack.c.b16 %v473, %v472
        %v478 = vpack.c.b16 %v475, %v474
        %v479 = vpack.c.b16 %v476, %v476
        %v483 = vsel %vm204, %v479, 0
        %485 = vmatprep.subr.bf16.mxu0 0
        %486 = vmatpush1.bf16.msra.mxu0 %v477
        %487 = vmatprep.subr.bf16.mxu0 0
        %488 = vmatpush1.bf16.msra.mxu0 %v478
        %489 = vmatprep.subr.bf16.mxu0 0
        %490 = vmatpush1.bf16.msra.mxu0 %v483
        %491 = vmatprep.subr.bf16.mxu0 0
        %492 = vmatpush1.bf16.msra.mxu0 0
        %493 = vmatprep.subr.bf16.mxu0 0
        %494 = vmatpush1.bf16.msra.mxu0 0
        %495 = vmatprep.subr.bf16.mxu0 0
        %496 = vmatpush1.bf16.msra.mxu0 0
        %497 = vmatprep.subr.bf16.mxu0 0
        %498 = vmatpush1.bf16.msra.mxu0 0
        %499 = vmatprep.subr.bf16.mxu0 0
        %500 = vmatpush1.bf16.msra.mxu0 0
        %501 = vmatprep.subr.bf16.mxu0 0
        %502 = vmatpush1.bf16.msra.mxu0 0
        %503 = vmatprep.subr.bf16.mxu0 0
        %504 = vmatpush1.bf16.msra.mxu0 0
        %505 = vmatprep.subr.bf16.mxu0 0
        %506 = vmatpush1.bf16.msra.mxu0 0
        %507 = vmatprep.subr.bf16.mxu0 0
        %508 = vmatpush1.bf16.msra.mxu0 0
        %509 = vmatprep.subr.bf16.mxu0 0
        %510 = vmatpush1.bf16.msra.mxu0 0
        %511 = vmatprep.subr.bf16.mxu0 0
        %512 = vmatpush1.bf16.msra.mxu0 0
        %513 = vmatprep.subr.bf16.mxu0 0
        %514 = vmatpush1.bf16.msra.mxu0 0
        %515 = vmatprep.subr.bf16.mxu0 0
        %516 = vmatpush1.bf16.msra.mxu0 0
        %517 = vmatprep.mubr.bf16.mxu0 0
        %518 = vmatmul.mubr.bf16.gmra.mrb[0].mxu0 %v202
        %v519 = vpop.f32.mrb[0].mxu0
        %v520 = vadd.f32 0.0, %v519
        %v521 = vpop.f32.mrb[0].mxu0
        %v522 = vpop.f32.mrb[0].mxu0
        %v523 = vpop.f32.mrb[0].mxu0
        %524 = vdwg.mxu0
        %v525 = vmax.f32 %v520, 0.0
        %v526 = vpack.c.bf16 %v525, %v525
        %s527 = scalar_lea.vmem %s155, 100 [#allocation5]
        %v528 = vld [vmem:[%s527] sm:$0xf]
        %v529 = vld [vmem:[%s527 + $0x4] sm:$0xf]
        %v530 = vld [vmem:[%s527 + $0x8] sm:$0xf]
        %v531 = vld [vmem:[%s527 + $0xc] sm:$0xf]
        %v532 = vld [vmem:[%s527 + $0x10] sm:$0xf]
        %v538 = vunpack.c.l.b16 %v528
        %v539 = vunpack.c.l.b16 %v529
        %v540 = vunpack.c.l.b16 %v530
        %v541 = vunpack.c.l.b16 %v531
        %v542 = vunpack.c.l.b16 %v532
        %v543 = vpack.c.b16 %v539, %v538
        %v544 = vpack.c.b16 %v541, %v540
        %v545 = vpack.c.b16 %v542, %v542
        %v549 = vsel %vm200, %v526, 0
        %v552 = vsel %vm204, %v545, 0
        %554 = vmatprep.subr.bf16.mxu0 0
        %555 = vmatpush1.bf16.msra.mxu0 %v543
        %556 = vmatprep.subr.bf16.mxu0 0
        %557 = vmatpush1.bf16.msra.mxu0 %v544
        %558 = vmatprep.subr.bf16.mxu0 0
        %559 = vmatpush1.bf16.msra.mxu0 %v552
        %560 = vmatprep.subr.bf16.mxu0 0
        %561 = vmatpush1.bf16.msra.mxu0 0
        %562 = vmatprep.subr.bf16.mxu0 0
        %563 = vmatpush1.bf16.msra.mxu0 0
        %564 = vmatprep.subr.bf16.mxu0 0
        %565 = vmatpush1.bf16.msra.mxu0 0
        %566 = vmatprep.subr.bf16.mxu0 0
        %567 = vmatpush1.bf16.msra.mxu0 0
        %568 = vmatprep.subr.bf16.mxu0 0
        %569 = vmatpush1.bf16.msra.mxu0 0
        %570 = vmatprep.subr.bf16.mxu0 0
        %571 = vmatpush1.bf16.msra.mxu0 0
        %572 = vmatprep.subr.bf16.mxu0 0
        %573 = vmatpush1.bf16.msra.mxu0 0
        %574 = vmatprep.subr.bf16.mxu0 0
        %575 = vmatpush1.bf16.msra.mxu0 0
        %576 = vmatprep.subr.bf16.mxu0 0
        %577 = vmatpush1.bf16.msra.mxu0 0
        %578 = vmatprep.subr.bf16.mxu0 0
        %579 = vmatpush1.bf16.msra.mxu0 0
        %580 = vmatprep.subr.bf16.mxu0 0
        %581 = vmatpush1.bf16.msra.mxu0 0
        %582 = vmatprep.subr.bf16.mxu0 0
        %583 = vmatpush1.bf16.msra.mxu0 0
        %584 = vmatprep.subr.bf16.mxu0 0
        %585 = vmatpush1.bf16.msra.mxu0 0
        %586 = vmatprep.mubr.bf16.mxu0 0
        %587 = vmatmul.mubr.bf16.gmra.mrb[0].mxu0 %v549
        %v588 = vpop.f32.mrb[0].mxu0
        %v589 = vadd.f32 0.0, %v588
        %v590 = vpop.f32.mrb[0].mxu0
        %v591 = vpop.f32.mrb[0].mxu0
        %v592 = vpop.f32.mrb[0].mxu0
        %593 = vdwg.mxu0
        %v594 = vmax.f32 %v589, 0.0
        %v595 = vpack.c.bf16 %v594, %v594
        %s596 = scalar_lea.vmem %s155, 120 [#allocation5]
        %v597 = vld [vmem:[%s596] sm:$0xf]
        %v598 = vld [vmem:[%s596 + $0x4] sm:$0xf]
        %v599 = vld [vmem:[%s596 + $0x8] sm:$0xf]
        %v600 = vld [vmem:[%s596 + $0xc] sm:$0xf]
        %v601 = vld [vmem:[%s596 + $0x10] sm:$0xf]
        %v607 = vunpack.c.l.b16 %v597
        %v608 = vunpack.c.l.b16 %v598
        %v609 = vunpack.c.l.b16 %v599
        %v610 = vunpack.c.l.b16 %v600
        %v611 = vunpack.c.l.b16 %v601
        %v612 = vpack.c.b16 %v608, %v607
        %v613 = vpack.c.b16 %v610, %v609
        %v614 = vpack.c.b16 %v611, %v611
        %v618 = vsel %vm200, %v595, 0
        %v621 = vsel %vm204, %v614, 0
        %623 = vmatprep.subr.bf16.mxu0 0
        %624 = vmatpush1.bf16.msra.mxu0 %v612
        %625 = vmatprep.subr.bf16.mxu0 0
        %626 = vmatpush1.bf16.msra.mxu0 %v613
        %627 = vmatprep.subr.bf16.mxu0 0
        %628 = vmatpush1.bf16.msra.mxu0 %v621
        %629 = vmatprep.subr.bf16.mxu0 0
        %630 = vmatpush1.bf16.msra.mxu0 0
        %631 = vmatprep.subr.bf16.mxu0 0
        %632 = vmatpush1.bf16.msra.mxu0 0
        %633 = vmatprep.subr.bf16.mxu0 0
        %634 = vmatpush1.bf16.msra.mxu0 0
        %635 = vmatprep.subr.bf16.mxu0 0
        %636 = vmatpush1.bf16.msra.mxu0 0
        %637 = vmatprep.subr.bf16.mxu0 0
        %638 = vmatpush1.bf16.msra.mxu0 0
        %639 = vmatprep.subr.bf16.mxu0 0
        %640 = vmatpush1.bf16.msra.mxu0 0
        %641 = vmatprep.subr.bf16.mxu0 0
        %642 = vmatpush1.bf16.msra.mxu0 0
        %643 = vmatprep.subr.bf16.mxu0 0
        %644 = vmatpush1.bf16.msra.mxu0 0
        %645 = vmatprep.subr.bf16.mxu0 0
        %646 = vmatpush1.bf16.msra.mxu0 0
        %647 = vmatprep.subr.bf16.mxu0 0
        %648 = vmatpush1.bf16.msra.mxu0 0
        %649 = vmatprep.subr.bf16.mxu0 0
        %650 = vmatpush1.bf16.msra.mxu0 0
        %651 = vmatprep.subr.bf16.mxu0 0
        %652 = vmatpush1.bf16.msra.mxu0 0
        %653 = vmatprep.subr.bf16.mxu0 0
        %654 = vmatpush1.bf16.msra.mxu0 0
        %655 = vmatprep.mubr.bf16.mxu0 0
        %656 = vmatmul.mubr.bf16.gmra.mrb[0].mxu0 %v618
        %v657 = vpop.f32.mrb[0].mxu0
        %v658 = vadd.f32 0.0, %v657
        %v659 = vpop.f32.mrb[0].mxu0
        %v660 = vpop.f32.mrb[0].mxu0
        %v661 = vpop.f32.mrb[0].mxu0
        %662 = vdwg.mxu0
        %v663 = vmax.f32 %v658, 0.0
        %v664 = vpack.c.bf16 %v663, %v663
        %s665 = scalar_lea.vmem %s155, 140 [#allocation5]
        %v666 = vld [vmem:[%s665] sm:$0xf]
        %v667 = vld [vmem:[%s665 + $0x4] sm:$0xf]
        %v668 = vld [vmem:[%s665 + $0x8] sm:$0xf]
        %v669 = vld [vmem:[%s665 + $0xc] sm:$0xf]
        %v670 = vld [vmem:[%s665 + $0x10] sm:$0xf]
        %v676 = vunpack.c.l.b16 %v666
        %v677 = vunpack.c.l.b16 %v667
        %v678 = vunpack.c.l.b16 %v668
        %v679 = vunpack.c.l.b16 %v669
        %v680 = vunpack.c.l.b16 %v670
        %v681 = vpack.c.b16 %v677, %v676
        %v682 = vpack.c.b16 %v679, %v678
        %v683 = vpack.c.b16 %v680, %v680
        %v687 = vsel %vm200, %v664, 0
        %v690 = vsel %vm204, %v683, 0
        %692 = vmatprep.subr.bf16.mxu0 0
        %693 = vmatpush1.bf16.msra.mxu0 %v681
        %694 = vmatprep.subr.bf16.mxu0 0
        %695 = vmatpush1.bf16.msra.mxu0 %v682
        %696 = vmatprep.subr.bf16.mxu0 0
        %697 = vmatpush1.bf16.msra.mxu0 %v690
        %698 = vmatprep.subr.bf16.mxu0 0
        %699 = vmatpush1.bf16.msra.mxu0 0
        %700 = vmatprep.subr.bf16.mxu0 0
        %701 = vmatpush1.bf16.msra.mxu0 0
        %702 = vmatprep.subr.bf16.mxu0 0
        %703 = vmatpush1.bf16.msra.mxu0 0
        %704 = vmatprep.subr.bf16.mxu0 0
        %705 = vmatpush1.bf16.msra.mxu0 0
        %706 = vmatprep.subr.bf16.mxu0 0
        %707 = vmatpush1.bf16.msra.mxu0 0
        %708 = vmatprep.subr.bf16.mxu0 0
        %709 = vmatpush1.bf16.msra.mxu0 0
        %710 = vmatprep.subr.bf16.mxu0 0
        %711 = vmatpush1.bf16.msra.mxu0 0
        %712 = vmatprep.subr.bf16.mxu0 0
        %713 = vmatpush1.bf16.msra.mxu0 0
        %714 = vmatprep.subr.bf16.mxu0 0
        %715 = vmatpush1.bf16.msra.mxu0 0
        %716 = vmatprep.subr.bf16.mxu0 0
        %717 = vmatpush1.bf16.msra.mxu0 0
        %718 = vmatprep.subr.bf16.mxu0 0
        %719 = vmatpush1.bf16.msra.mxu0 0
        %720 = vmatprep.subr.bf16.mxu0 0
        %721 = vmatpush1.bf16.msra.mxu0 0
        %722 = vmatprep.subr.bf16.mxu0 0
        %723 = vmatpush1.bf16.msra.mxu0 0
        %724 = vmatprep.mubr.bf16.mxu0 0
        %725 = vmatmul.mubr.bf16.gmra.mrb[0].mxu0 %v687
        %v726 = vpop.f32.mrb[0].mxu0
        %v727 = vadd.f32 0.0, %v726
        %v728 = vpop.f32.mrb[0].mxu0
        %v729 = vpop.f32.mrb[0].mxu0
        %v730 = vpop.f32.mrb[0].mxu0
        %731 = vdwg.mxu0
        %v732 = vsub.f32 0.0, %v727
        %v733 = vmul.f32 %v732, 1.442695
        %v734 = vpow.pop %v733
        %v735 = vadd.f32 %v734, 1.0
        %v736 = vrcp.pop %v735
        %s737 = scalar_lea.vmem %s175, 8 [#allocation7]
        %738 = vst [vmem:[%s737] sm:$0xff] %v736
        %s739 = scalar_lea.vmem %s155, 160 [#allocation5]
        %v740 = vld [vmem:[%s739] sm:$0xf]
        %v741 = vld [vmem:[%s739 + $0x4] sm:$0xf]
        %v742 = vld [vmem:[%s739 + $0x8] sm:$0xf]
        %v743 = vld [vmem:[%s739 + $0xc] sm:$0xf]
        %v744 = vld [vmem:[%s739 + $0x10] sm:$0xf]
        %v750 = vunpack.c.l.b16 %v740
        %v751 = vunpack.c.l.b16 %v741
        %v752 = vunpack.c.l.b16 %v742
        %v753 = vunpack.c.l.b16 %v743
        %v754 = vunpack.c.l.b16 %v744
        %v755 = vpack.c.b16 %v751, %v750
        %v756 = vpack.c.b16 %v753, %v752
        %v757 = vpack.c.b16 %v754, %v754
        %v761 = vsel %vm204, %v757, 0
        %763 = vmatprep.subr.bf16.mxu0 0
        %764 = vmatpush1.bf16.msra.mxu0 %v755
        %765 = vmatprep.subr.bf16.mxu0 0
        %766 = vmatpush1.bf16.msra.mxu0 %v756
        %767 = vmatprep.subr.bf16.mxu0 0
        %768 = vmatpush1.bf16.msra.mxu0 %v761
        %769 = vmatprep.subr.bf16.mxu0 0
        %770 = vmatpush1.bf16.msra.mxu0 0
        %771 = vmatprep.subr.bf16.mxu0 0
        %772 = vmatpush1.bf16.msra.mxu0 0
        %773 = vmatprep.subr.bf16.mxu0 0
        %774 = vmatpush1.bf16.msra.mxu0 0
        %775 = vmatprep.subr.bf16.mxu0 0
        %776 = vmatpush1.bf16.msra.mxu0 0
        %777 = vmatprep.subr.bf16.mxu0 0
        %778 = vmatpush1.bf16.msra.mxu0 0
        %779 = vmatprep.subr.bf16.mxu0 0
        %780 = vmatpush1.bf16.msra.mxu0 0
        %781 = vmatprep.subr.bf16.mxu0 0
        %782 = vmatpush1.bf16.msra.mxu0 0
        %783 = vmatprep.subr.bf16.mxu0 0
        %784 = vmatpush1.bf16.msra.mxu0 0
        %785 = vmatprep.subr.bf16.mxu0 0
        %786 = vmatpush1.bf16.msra.mxu0 0
        %787 = vmatprep.subr.bf16.mxu0 0
        %788 = vmatpush1.bf16.msra.mxu0 0
        %789 = vmatprep.subr.bf16.mxu0 0
        %790 = vmatpush1.bf16.msra.mxu0 0
        %791 = vmatprep.subr.bf16.mxu0 0
        %792 = vmatpush1.bf16.msra.mxu0 0
        %793 = vmatprep.subr.bf16.mxu0 0
        %794 = vmatpush1.bf16.msra.mxu0 0
        %795 = vmatprep.mubr.bf16.mxu0 0
        %796 = vmatmul.mubr.bf16.gmra.mrb[0].mxu0 %v202
        %v797 = vpop.f32.mrb[0].mxu0
        %v798 = vadd.f32 0.0, %v797
        %v799 = vpop.f32.mrb[0].mxu0
        %v800 = vpop.f32.mrb[0].mxu0
        %v801 = vpop.f32.mrb[0].mxu0
        %802 = vdwg.mxu0
        %v803 = vmax.f32 %v798, 0.0
        %v804 = vpack.c.bf16 %v803, %v803
        %s805 = scalar_lea.vmem %s155, 180 [#allocation5]
        %v806 = vld [vmem:[%s805] sm:$0xf]
        %v807 = vld [vmem:[%s805 + $0x4] sm:$0xf]
        %v808 = vld [vmem:[%s805 + $0x8] sm:$0xf]
        %v809 = vld [vmem:[%s805 + $0xc] sm:$0xf]
        %v810 = vld [vmem:[%s805 + $0x10] sm:$0xf]
        %v816 = vunpack.c.l.b16 %v806
        %v817 = vunpack.c.l.b16 %v807
        %v818 = vunpack.c.l.b16 %v808
        %v819 = vunpack.c.l.b16 %v809
        %v820 = vunpack.c.l.b16 %v810
        %v821 = vpack.c.b16 %v817, %v816
        %v822 = vpack.c.b16 %v819, %v818
        %v823 = vpack.c.b16 %v820, %v820
        %v827 = vsel %vm200, %v804, 0
        %v830 = vsel %vm204, %v823, 0
        %832 = vmatprep.subr.bf16.mxu0 0
        %833 = vmatpush1.bf16.msra.mxu0 %v821
        %834 = vmatprep.subr.bf16.mxu0 0
        %835 = vmatpush1.bf16.msra.mxu0 %v822
        %836 = vmatprep.subr.bf16.mxu0 0
        %837 = vmatpush1.bf16.msra.mxu0 %v830
        %838 = vmatprep.subr.bf16.mxu0 0
        %839 = vmatpush1.bf16.msra.mxu0 0
        %840 = vmatprep.subr.bf16.mxu0 0
        %841 = vmatpush1.bf16.msra.mxu0 0
        %842 = vmatprep.subr.bf16.mxu0 0
        %843 = vmatpush1.bf16.msra.mxu0 0
        %844 = vmatprep.subr.bf16.mxu0 0
        %845 = vmatpush1.bf16.msra.mxu0 0
        %846 = vmatprep.subr.bf16.mxu0 0
        %847 = vmatpush1.bf16.msra.mxu0 0
        %848 = vmatprep.subr.bf16.mxu0 0
        %849 = vmatpush1.bf16.msra.mxu0 0
        %850 = vmatprep.subr.bf16.mxu0 0
        %851 = vmatpush1.bf16.msra.mxu0 0
        %852 = vmatprep.subr.bf16.mxu0 0
        %853 = vmatpush1.bf16.msra.mxu0 0
        %854 = vmatprep.subr.bf16.mxu0 0
        %855 = vmatpush1.bf16.msra.mxu0 0
        %856 = vmatprep.subr.bf16.mxu0 0
        %857 = vmatpush1.bf16.msra.mxu0 0
        %858 = vmatprep.subr.bf16.mxu0 0
        %859 = vmatpush1.bf16.msra.mxu0 0
        %860 = vmatprep.subr.bf16.mxu0 0
        %861 = vmatpush1.bf16.msra.mxu0 0
        %862 = vmatprep.subr.bf16.mxu0 0
        %863 = vmatpush1.bf16.msra.mxu0 0
        %864 = vmatprep.mubr.bf16.mxu0 0
        %865 = vmatmul.mubr.bf16.gmra.mrb[0].mxu0 %v827
        %v866 = vpop.f32.mrb[0].mxu0
        %v867 = vadd.f32 0.0, %v866
        %v868 = vpop.f32.mrb[0].mxu0
        %v869 = vpop.f32.mrb[0].mxu0
        %v870 = vpop.f32.mrb[0].mxu0
        %871 = vdwg.mxu0
        %v872 = vmax.f32 %v867, 0.0
        %v873 = vpack.c.bf16 %v872, %v872
        %s874 = scalar_lea.vmem %s155, 200 [#allocation5]
        %v875 = vld [vmem:[%s874] sm:$0xf]
        %v876 = vld [vmem:[%s874 + $0x4] sm:$0xf]
        %v877 = vld [vmem:[%s874 + $0x8] sm:$0xf]
        %v878 = vld [vmem:[%s874 + $0xc] sm:$0xf]
        %v879 = vld [vmem:[%s874 + $0x10] sm:$0xf]
        %v885 = vunpack.c.l.b16 %v875
        %v886 = vunpack.c.l.b16 %v876
        %v887 = vunpack.c.l.b16 %v877
        %v888 = vunpack.c.l.b16 %v878
        %v889 = vunpack.c.l.b16 %v879
        %v890 = vpack.c.b16 %v886, %v885
        %v891 = vpack.c.b16 %v888, %v887
        %v892 = vpack.c.b16 %v889, %v889
        %v896 = vsel %vm200, %v873, 0
        %v899 = vsel %vm204, %v892, 0
        %901 = vmatprep.subr.bf16.mxu0 0
        %902 = vmatpush1.bf16.msra.mxu0 %v890
        %903 = vmatprep.subr.bf16.mxu0 0
        %904 = vmatpush1.bf16.msra.mxu0 %v891
        %905 = vmatprep.subr.bf16.mxu0 0
        %906 = vmatpush1.bf16.msra.mxu0 %v899
        %907 = vmatprep.subr.bf16.mxu0 0
        %908 = vmatpush1.bf16.msra.mxu0 0
        %909 = vmatprep.subr.bf16.mxu0 0
        %910 = vmatpush1.bf16.msra.mxu0 0
        %911 = vmatprep.subr.bf16.mxu0 0
        %912 = vmatpush1.bf16.msra.mxu0 0
        %913 = vmatprep.subr.bf16.mxu0 0
        %914 = vmatpush1.bf16.msra.mxu0 0
        %915 = vmatprep.subr.bf16.mxu0 0
        %916 = vmatpush1.bf16.msra.mxu0 0
        %917 = vmatprep.subr.bf16.mxu0 0
        %918 = vmatpush1.bf16.msra.mxu0 0
        %919 = vmatprep.subr.bf16.mxu0 0
        %920 = vmatpush1.bf16.msra.mxu0 0
        %921 = vmatprep.subr.bf16.mxu0 0
        %922 = vmatpush1.bf16.msra.mxu0 0
        %923 = vmatprep.subr.bf16.mxu0 0
        %924 = vmatpush1.bf16.msra.mxu0 0
        %925 = vmatprep.subr.bf16.mxu0 0
        %926 = vmatpush1.bf16.msra.mxu0 0
        %927 = vmatprep.subr.bf16.mxu0 0
        %928 = vmatpush1.bf16.msra.mxu0 0
        %929 = vmatprep.subr.bf16.mxu0 0
        %930 = vmatpush1.bf16.msra.mxu0 0
        %931 = vmatprep.subr.bf16.mxu0 0
        %932 = vmatpush1.bf16.msra.mxu0 0
        %933 = vmatprep.mubr.bf16.mxu0 0
        %934 = vmatmul.mubr.bf16.gmra.mrb[0].mxu0 %v896
        %v935 = vpop.f32.mrb[0].mxu0
        %v936 = vadd.f32 0.0, %v935
        %v937 = vpop.f32.mrb[0].mxu0
        %v938 = vpop.f32.mrb[0].mxu0
        %v939 = vpop.f32.mrb[0].mxu0
        %940 = vdwg.mxu0
        %v941 = vmax.f32 %v936, 0.0
        %v942 = vpack.c.bf16 %v941, %v941
        %s943 = scalar_lea.vmem %s155, 220 [#allocation5]
        %v944 = vld [vmem:[%s943] sm:$0xf]
        %v945 = vld [vmem:[%s943 + $0x4] sm:$0xf]
        %v946 = vld [vmem:[%s943 + $0x8] sm:$0xf]
        %v947 = vld [vmem:[%s943 + $0xc] sm:$0xf]
        %v948 = vld [vmem:[%s943 + $0x10] sm:$0xf]
        %v954 = vunpack.c.l.b16 %v944
        %v955 = vunpack.c.l.b16 %v945
        %v956 = vunpack.c.l.b16 %v946
        %v957 = vunpack.c.l.b16 %v947
        %v958 = vunpack.c.l.b16 %v948
        %v959 = vpack.c.b16 %v955, %v954
        %v960 = vpack.c.b16 %v957, %v956
        %v961 = vpack.c.b16 %v958, %v958
        %v965 = vsel %vm200, %v942, 0
        %v968 = vsel %vm204, %v961, 0
        %970 = vmatprep.subr.bf16.mxu0 0
        %971 = vmatpush1.bf16.msra.mxu0 %v959
        %972 = vmatprep.subr.bf16.mxu0 0
        %973 = vmatpush1.bf16.msra.mxu0 %v960
        %974 = vmatprep.subr.bf16.mxu0 0
        %975 = vmatpush1.bf16.msra.mxu0 %v968
        %976 = vmatprep.subr.bf16.mxu0 0
        %977 = vmatpush1.bf16.msra.mxu0 0
        %978 = vmatprep.subr.bf16.mxu0 0
        %979 = vmatpush1.bf16.msra.mxu0 0
        %980 = vmatprep.subr.bf16.mxu0 0
        %981 = vmatpush1.bf16.msra.mxu0 0
        %982 = vmatprep.subr.bf16.mxu0 0
        %983 = vmatpush1.bf16.msra.mxu0 0
        %984 = vmatprep.subr.bf16.mxu0 0
        %985 = vmatpush1.bf16.msra.mxu0 0
        %986 = vmatprep.subr.bf16.mxu0 0
        %987 = vmatpush1.bf16.msra.mxu0 0
        %988 = vmatprep.subr.bf16.mxu0 0
        %989 = vmatpush1.bf16.msra.mxu0 0
        %990 = vmatprep.subr.bf16.mxu0 0
        %991 = vmatpush1.bf16.msra.mxu0 0
        %992 = vmatprep.subr.bf16.mxu0 0
        %993 = vmatpush1.bf16.msra.mxu0 0
        %994 = vmatprep.subr.bf16.mxu0 0
        %995 = vmatpush1.bf16.msra.mxu0 0
        %996 = vmatprep.subr.bf16.mxu0 0
        %997 = vmatpush1.bf16.msra.mxu0 0
        %998 = vmatprep.subr.bf16.mxu0 0
        %999 = vmatpush1.bf16.msra.mxu0 0
        %1000 = vmatprep.subr.bf16.mxu0 0
        %1001 = vmatpush1.bf16.msra.mxu0 0
        %1002 = vmatprep.mubr.bf16.mxu0 0
        %1003 = vmatmul.mubr.bf16.gmra.mrb[0].mxu0 %v965
        %v1004 = vpop.f32.mrb[0].mxu0
        %v1005 = vadd.f32 0.0, %v1004
        %v1006 = vpop.f32.mrb[0].mxu0
        %v1007 = vpop.f32.mrb[0].mxu0
        %v1008 = vpop.f32.mrb[0].mxu0
        %1009 = vdwg.mxu0
        %v1010 = vsub.f32 0.0, %v1005
        %v1011 = vmul.f32 %v1010, 1.442695
        %v1012 = vpow.pop %v1011
        %v1013 = vadd.f32 %v1012, 1.0
        %v1014 = vrcp.pop %v1013
        %s1015 = scalar_lea.vmem %s175, 16 [#allocation7]
        %1016 = vst [vmem:[%s1015] sm:$0xff] %v1014
        %s1017 = scalar_lea.vmem %s155, 240 [#allocation5]
        %v1018 = vld [vmem:[%s1017] sm:$0xf]
        %v1019 = vld [vmem:[%s1017 + $0x4] sm:$0xf]
        %v1020 = vld [vmem:[%s1017 + $0x8] sm:$0xf]
        %v1021 = vld [vmem:[%s1017 + $0xc] sm:$0xf]
        %v1022 = vld [vmem:[%s1017 + $0x10] sm:$0xf]
        %v1028 = vunpack.c.l.b16 %v1018
        %v1029 = vunpack.c.l.b16 %v1019
        %v1030 = vunpack.c.l.b16 %v1020
        %v1031 = vunpack.c.l.b16 %v1021
        %v1032 = vunpack.c.l.b16 %v1022
        %v1033 = vpack.c.b16 %v1029, %v1028
        %v1034 = vpack.c.b16 %v1031, %v1030
        %v1035 = vpack.c.b16 %v1032, %v1032
        %v1039 = vsel %vm204, %v1035, 0
        %1041 = vmatprep.subr.bf16.mxu0 0
        %1042 = vmatpush1.bf16.msra.mxu0 %v1033
        %1043 = vmatprep.subr.bf16.mxu0 0
        %1044 = vmatpush1.bf16.msra.mxu0 %v1034
        %1045 = vmatprep.subr.bf16.mxu0 0
        %1046 = vmatpush1.bf16.msra.mxu0 %v1039
        %1047 = vmatprep.subr.bf16.mxu0 0
        %1048 = vmatpush1.bf16.msra.mxu0 0
        %1049 = vmatprep.subr.bf16.mxu0 0
        %1050 = vmatpush1.bf16.msra.mxu0 0
        %1051 = vmatprep.subr.bf16.mxu0 0
        %1052 = vmatpush1.bf16.msra.mxu0 0
        %1053 = vmatprep.subr.bf16.mxu0 0
        %1054 = vmatpush1.bf16.msra.mxu0 0
        %1055 = vmatprep.subr.bf16.mxu0 0
        %1056 = vmatpush1.bf16.msra.mxu0 0
        %1057 = vmatprep.subr.bf16.mxu0 0
        %1058 = vmatpush1.bf16.msra.mxu0 0
        %1059 = vmatprep.subr.bf16.mxu0 0
        %1060 = vmatpush1.bf16.msra.mxu0 0
        %1061 = vmatprep.subr.bf16.mxu0 0
        %1062 = vmatpush1.bf16.msra.mxu0 0
        %1063 = vmatprep.subr.bf16.mxu0 0
        %1064 = vmatpush1.bf16.msra.mxu0 0
        %1065 = vmatprep.subr.bf16.mxu0 0
        %1066 = vmatpush1.bf16.msra.mxu0 0
        %1067 = vmatprep.subr.bf16.mxu0 0
        %1068 = vmatpush1.bf16.msra.mxu0 0
        %1069 = vmatprep.subr.bf16.mxu0 0
        %1070 = vmatpush1.bf16.msra.mxu0 0
        %1071 = vmatprep.subr.bf16.mxu0 0
        %1072 = vmatpush1.bf16.msra.mxu0 0
        %1073 = vmatprep.mubr.bf16.mxu0 0
        %1074 = vmatmul.mubr.bf16.gmra.mrb[0].mxu0 %v202
        %v1075 = vpop.f32.mrb[0].mxu0
        %v1076 = vadd.f32 0.0, %v1075
        %v1077 = vpop.f32.mrb[0].mxu0
        %v1078 = vpop.f32.mrb[0].mxu0
        %v1079 = vpop.f32.mrb[0].mxu0
        %1080 = vdwg.mxu0
        %v1081 = vmax.f32 %v1076, 0.0
        %v1082 = vpack.c.bf16 %v1081, %v1081
        %s1083 = scalar_lea.vmem %s155, 260 [#allocation5]
        %v1084 = vld [vmem:[%s1083] sm:$0xf]
        %v1085 = vld [vmem:[%s1083 + $0x4] sm:$0xf]
        %v1086 = vld [vmem:[%s1083 + $0x8] sm:$0xf]
        %v1087 = vld [vmem:[%s1083 + $0xc] sm:$0xf]
        %v1088 = vld [vmem:[%s1083 + $0x10] sm:$0xf]
        %v1094 = vunpack.c.l.b16 %v1084
        %v1095 = vunpack.c.l.b16 %v1085
        %v1096 = vunpack.c.l.b16 %v1086
        %v1097 = vunpack.c.l.b16 %v1087
        %v1098 = vunpack.c.l.b16 %v1088
        %v1099 = vpack.c.b16 %v1095, %v1094
        %v1100 = vpack.c.b16 %v1097, %v1096
        %v1101 = vpack.c.b16 %v1098, %v1098
        %v1105 = vsel %vm200, %v1082, 0
        %v1108 = vsel %vm204, %v1101, 0
        %1110 = vmatprep.subr.bf16.mxu0 0
        %1111 = vmatpush1.bf16.msra.mxu0 %v1099
        %1112 = vmatprep.subr.bf16.mxu0 0
        %1113 = vmatpush1.bf16.msra.mxu0 %v1100
        %1114 = vmatprep.subr.bf16.mxu0 0
        %1115 = vmatpush1.bf16.msra.mxu0 %v1108
        %1116 = vmatprep.subr.bf16.mxu0 0
        %1117 = vmatpush1.bf16.msra.mxu0 0
        %1118 = vmatprep.subr.bf16.mxu0 0
        %1119 = vmatpush1.bf16.msra.mxu0 0
        %1120 = vmatprep.subr.bf16.mxu0 0
        %1121 = vmatpush1.bf16.msra.mxu0 0
        %1122 = vmatprep.subr.bf16.mxu0 0
        %1123 = vmatpush1.bf16.msra.mxu0 0
        %1124 = vmatprep.subr.bf16.mxu0 0
        %1125 = vmatpush1.bf16.msra.mxu0 0
        %1126 = vmatprep.subr.bf16.mxu0 0
        %1127 = vmatpush1.bf16.msra.mxu0 0
        %1128 = vmatprep.subr.bf16.mxu0 0
        %1129 = vmatpush1.bf16.msra.mxu0 0
        %1130 = vmatprep.subr.bf16.mxu0 0
        %1131 = vmatpush1.bf16.msra.mxu0 0
        %1132 = vmatprep.subr.bf16.mxu0 0
        %1133 = vmatpush1.bf16.msra.mxu0 0
        %1134 = vmatprep.subr.bf16.mxu0 0
        %1135 = vmatpush1.bf16.msra.mxu0 0
        %1136 = vmatprep.subr.bf16.mxu0 0
        %1137 = vmatpush1.bf16.msra.mxu0 0
        %1138 = vmatprep.subr.bf16.mxu0 0
        %1139 = vmatpush1.bf16.msra.mxu0 0
        %1140 = vmatprep.subr.bf16.mxu0 0
        %1141 = vmatpush1.bf16.msra.mxu0 0
        %1142 = vmatprep.mubr.bf16.mxu0 0
        %1143 = vmatmul.mubr.bf16.gmra.mrb[0].mxu0 %v1105
        %v1144 = vpop.f32.mrb[0].mxu0
        %v1145 = vadd.f32 0.0, %v1144
        %v1146 = vpop.f32.mrb[0].mxu0
        %v1147 = vpop.f32.mrb[0].mxu0
        %v1148 = vpop.f32.mrb[0].mxu0
        %1149 = vdwg.mxu0
        %v1150 = vmax.f32 %v1145, 0.0
        %v1151 = vpack.c.bf16 %v1150, %v1150
        %s1152 = scalar_lea.vmem %s155, 280 [#allocation5]
        %v1153 = vld [vmem:[%s1152] sm:$0xf]
        %v1154 = vld [vmem:[%s1152 + $0x4] sm:$0xf]
        %v1155 = vld [vmem:[%s1152 + $0x8] sm:$0xf]
        %v1156 = vld [vmem:[%s1152 + $0xc] sm:$0xf]
        %v1157 = vld [vmem:[%s1152 + $0x10] sm:$0xf]
        %v1163 = vunpack.c.l.b16 %v1153
        %v1164 = vunpack.c.l.b16 %v1154
        %v1165 = vunpack.c.l.b16 %v1155
        %v1166 = vunpack.c.l.b16 %v1156
        %v1167 = vunpack.c.l.b16 %v1157
        %v1168 = vpack.c.b16 %v1164, %v1163
        %v1169 = vpack.c.b16 %v1166, %v1165
        %v1170 = vpack.c.b16 %v1167, %v1167
        %v1174 = vsel %vm200, %v1151, 0
        %v1177 = vsel %vm204, %v1170, 0
        %1179 = vmatprep.subr.bf16.mxu0 0
        %1180 = vmatpush1.bf16.msra.mxu0 %v1168
        %1181 = vmatprep.subr.bf16.mxu0 0
        %1182 = vmatpush1.bf16.msra.mxu0 %v1169
        %1183 = vmatprep.subr.bf16.mxu0 0
        %1184 = vmatpush1.bf16.msra.mxu0 %v1177
        %1185 = vmatprep.subr.bf16.mxu0 0
        %1186 = vmatpush1.bf16.msra.mxu0 0
        %1187 = vmatprep.subr.bf16.mxu0 0
        %1188 = vmatpush1.bf16.msra.mxu0 0
        %1189 = vmatprep.subr.bf16.mxu0 0
        %1190 = vmatpush1.bf16.msra.mxu0 0
        %1191 = vmatprep.subr.bf16.mxu0 0
        %1192 = vmatpush1.bf16.msra.mxu0 0
        %1193 = vmatprep.subr.bf16.mxu0 0
        %1194 = vmatpush1.bf16.msra.mxu0 0
        %1195 = vmatprep.subr.bf16.mxu0 0
        %1196 = vmatpush1.bf16.msra.mxu0 0
        %1197 = vmatprep.subr.bf16.mxu0 0
        %1198 = vmatpush1.bf16.msra.mxu0 0
        %1199 = vmatprep.subr.bf16.mxu0 0
        %1200 = vmatpush1.bf16.msra.mxu0 0
        %1201 = vmatprep.subr.bf16.mxu0 0
        %1202 = vmatpush1.bf16.msra.mxu0 0
        %1203 = vmatprep.subr.bf16.mxu0 0
        %1204 = vmatpush1.bf16.msra.mxu0 0
        %1205 = vmatprep.subr.bf16.mxu0 0
        %1206 = vmatpush1.bf16.msra.mxu0 0
        %1207 = vmatprep.subr.bf16.mxu0 0
        %1208 = vmatpush1.bf16.msra.mxu0 0
        %1209 = vmatprep.subr.bf16.mxu0 0
        %1210 = vmatpush1.bf16.msra.mxu0 0
        %1211 = vmatprep.mubr.bf16.mxu0 0
        %1212 = vmatmul.mubr.bf16.gmra.mrb[0].mxu0 %v1174
        %v1213 = vpop.f32.mrb[0].mxu0
        %v1214 = vadd.f32 0.0, %v1213
        %v1215 = vpop.f32.mrb[0].mxu0
        %v1216 = vpop.f32.mrb[0].mxu0
        %v1217 = vpop.f32.mrb[0].mxu0
        %1218 = vdwg.mxu0
        %v1219 = vmax.f32 %v1214, 0.0
        %v1220 = vpack.c.bf16 %v1219, %v1219
        %s1221 = scalar_lea.vmem %s155, 300 [#allocation5]
        %v1222 = vld [vmem:[%s1221] sm:$0xf]
        %v1223 = vld [vmem:[%s1221 + $0x4] sm:$0xf]
        %v1224 = vld [vmem:[%s1221 + $0x8] sm:$0xf]
        %v1225 = vld [vmem:[%s1221 + $0xc] sm:$0xf]
        %v1226 = vld [vmem:[%s1221 + $0x10] sm:$0xf]
        %v1232 = vunpack.c.l.b16 %v1222
        %v1233 = vunpack.c.l.b16 %v1223
        %v1234 = vunpack.c.l.b16 %v1224
        %v1235 = vunpack.c.l.b16 %v1225
        %v1236 = vunpack.c.l.b16 %v1226
        %v1237 = vpack.c.b16 %v1233, %v1232
        %v1238 = vpack.c.b16 %v1235, %v1234
        %v1239 = vpack.c.b16 %v1236, %v1236
        %v1243 = vsel %vm200, %v1220, 0
        %v1246 = vsel %vm204, %v1239, 0
        %1248 = vmatprep.subr.bf16.mxu0 0
        %1249 = vmatpush1.bf16.msra.mxu0 %v1237
        %1250 = vmatprep.subr.bf16.mxu0 0
        %1251 = vmatpush1.bf16.msra.mxu0 %v1238
        %1252 = vmatprep.subr.bf16.mxu0 0
        %1253 = vmatpush1.bf16.msra.mxu0 %v1246
        %1254 = vmatprep.subr.bf16.mxu0 0
        %1255 = vmatpush1.bf16.msra.mxu0 0
        %1256 = vmatprep.subr.bf16.mxu0 0
        %1257 = vmatpush1.bf16.msra.mxu0 0
        %1258 = vmatprep.subr.bf16.mxu0 0
        %1259 = vmatpush1.bf16.msra.mxu0 0
        %1260 = vmatprep.subr.bf16.mxu0 0
        %1261 = vmatpush1.bf16.msra.mxu0 0
        %1262 = vmatprep.subr.bf16.mxu0 0
        %1263 = vmatpush1.bf16.msra.mxu0 0
        %1264 = vmatprep.subr.bf16.mxu0 0
        %1265 = vmatpush1.bf16.msra.mxu0 0
        %1266 = vmatprep.subr.bf16.mxu0 0
        %1267 = vmatpush1.bf16.msra.mxu0 0
        %1268 = vmatprep.subr.bf16.mxu0 0
        %1269 = vmatpush1.bf16.msra.mxu0 0
        %1270 = vmatprep.subr.bf16.mxu0 0
        %1271 = vmatpush1.bf16.msra.mxu0 0
        %1272 = vmatprep.subr.bf16.mxu0 0
        %1273 = vmatpush1.bf16.msra.mxu0 0
        %1274 = vmatprep.subr.bf16.mxu0 0
        %1275 = vmatpush1.bf16.msra.mxu0 0
        %1276 = vmatprep.subr.bf16.mxu0 0
        %1277 = vmatpush1.bf16.msra.mxu0 0
        %1278 = vmatprep.subr.bf16.mxu0 0
        %1279 = vmatpush1.bf16.msra.mxu0 0
        %1280 = vmatprep.mubr.bf16.mxu0 0
        %1281 = vmatmul.mubr.bf16.gmra.mrb[0].mxu0 %v1243
        %v1282 = vpop.f32.mrb[0].mxu0
        %v1283 = vadd.f32 0.0, %v1282
        %v1284 = vpop.f32.mrb[0].mxu0
        %v1285 = vpop.f32.mrb[0].mxu0
        %v1286 = vpop.f32.mrb[0].mxu0
        %1287 = vdwg.mxu0
        %v1288 = vsub.f32 0.0, %v1283
        %v1289 = vmul.f32 %v1288, 1.442695
        %v1290 = vpow.pop %v1289
        %v1291 = vadd.f32 %v1290, 1.0
        %v1292 = vrcp.pop %v1291
        %s1293 = scalar_lea.vmem %s175, 24 [#allocation7]
        %1294 = vst [vmem:[%s1293] sm:$0xff] %v1292
        %s1295 = scalar_lea.vmem %s155, 320 [#allocation5]
        %v1296 = vld [vmem:[%s1295] sm:$0xf]
        %v1297 = vld [vmem:[%s1295 + $0x4] sm:$0xf]
        %v1298 = vld [vmem:[%s1295 + $0x8] sm:$0xf]
        %v1299 = vld [vmem:[%s1295 + $0xc] sm:$0xf]
        %v1300 = vld [vmem:[%s1295 + $0x10] sm:$0xf]
        %v1306 = vunpack.c.l.b16 %v1296
        %v1307 = vunpack.c.l.b16 %v1297
        %v1308 = vunpack.c.l.b16 %v1298
        %v1309 = vunpack.c.l.b16 %v1299
        %v1310 = vunpack.c.l.b16 %v1300
        %v1311 = vpack.c.b16 %v1307, %v1306
        %v1312 = vpack.c.b16 %v1309, %v1308
        %v1313 = vpack.c.b16 %v1310, %v1310
        %v1317 = vsel %vm204, %v1313, 0
        %1319 = vmatprep.subr.bf16.mxu0 0
        %1320 = vmatpush1.bf16.msra.mxu0 %v1311
        %1321 = vmatprep.subr.bf16.mxu0 0
        %1322 = vmatpush1.bf16.msra.mxu0 %v1312
        %1323 = vmatprep.subr.bf16.mxu0 0
        %1324 = vmatpush1.bf16.msra.mxu0 %v1317
        %1325 = vmatprep.subr.bf16.mxu0 0
        %1326 = vmatpush1.bf16.msra.mxu0 0
        %1327 = vmatprep.subr.bf16.mxu0 0
        %1328 = vmatpush1.bf16.msra.mxu0 0
        %1329 = vmatprep.subr.bf16.mxu0 0
        %1330 = vmatpush1.bf16.msra.mxu0 0
        %1331 = vmatprep.subr.bf16.mxu0 0
        %1332 = vmatpush1.bf16.msra.mxu0 0
        %1333 = vmatprep.subr.bf16.mxu0 0
        %1334 = vmatpush1.bf16.msra.mxu0 0
        %1335 = vmatprep.subr.bf16.mxu0 0
        %1336 = vmatpush1.bf16.msra.mxu0 0
        %1337 = vmatprep.subr.bf16.mxu0 0
        %1338 = vmatpush1.bf16.msra.mxu0 0
        %1339 = vmatprep.subr.bf16.mxu0 0
        %1340 = vmatpush1.bf16.msra.mxu0 0
        %1341 = vmatprep.subr.bf16.mxu0 0
        %1342 = vmatpush1.bf16.msra.mxu0 0
        %1343 = vmatprep.subr.bf16.mxu0 0
        %1344 = vmatpush1.bf16.msra.mxu0 0
        %1345 = vmatprep.subr.bf16.mxu0 0
        %1346 = vmatpush1.bf16.msra.mxu0 0
        %1347 = vmatprep.subr.bf16.mxu0 0
        %1348 = vmatpush1.bf16.msra.mxu0 0
        %1349 = vmatprep.subr.bf16.mxu0 0
        %1350 = vmatpush1.bf16.msra.mxu0 0
        %1351 = vmatprep.mubr.bf16.mxu0 0
        %1352 = vmatmul.mubr.bf16.gmra.mrb[0].mxu0 %v202
        %v1353 = vpop.f32.mrb[0].mxu0
        %v1354 = vadd.f32 0.0, %v1353
        %v1355 = vpop.f32.mrb[0].mxu0
        %v1356 = vpop.f32.mrb[0].mxu0
        %v1357 = vpop.f32.mrb[0].mxu0
        %1358 = vdwg.mxu0
        %v1359 = vmax.f32 %v1354, 0.0
        %v1360 = vpack.c.bf16 %v1359, %v1359
        %s1361 = scalar_lea.vmem %s155, 340 [#allocation5]
        %v1362 = vld [vmem:[%s1361] sm:$0xf]
        %v1363 = vld [vmem:[%s1361 + $0x4] sm:$0xf]
        %v1364 = vld [vmem:[%s1361 + $0x8] sm:$0xf]
        %v1365 = vld [vmem:[%s1361 + $0xc] sm:$0xf]
        %v1366 = vld [vmem:[%s1361 + $0x10] sm:$0xf]
        %v1372 = vunpack.c.l.b16 %v1362
        %v1373 = vunpack.c.l.b16 %v1363
        %v1374 = vunpack.c.l.b16 %v1364
        %v1375 = vunpack.c.l.b16 %v1365
        %v1376 = vunpack.c.l.b16 %v1366
        %v1377 = vpack.c.b16 %v1373, %v1372
        %v1378 = vpack.c.b16 %v1375, %v1374
        %v1379 = vpack.c.b16 %v1376, %v1376
        %v1383 = vsel %vm200, %v1360, 0
        %v1386 = vsel %vm204, %v1379, 0
        %1388 = vmatprep.subr.bf16.mxu0 0
        %1389 = vmatpush1.bf16.msra.mxu0 %v1377
        %1390 = vmatprep.subr.bf16.mxu0 0
        %1391 = vmatpush1.bf16.msra.mxu0 %v1378
        %1392 = vmatprep.subr.bf16.mxu0 0
        %1393 = vmatpush1.bf16.msra.mxu0 %v1386
        %1394 = vmatprep.subr.bf16.mxu0 0
        %1395 = vmatpush1.bf16.msra.mxu0 0
        %1396 = vmatprep.subr.bf16.mxu0 0
        %1397 = vmatpush1.bf16.msra.mxu0 0
        %1398 = vmatprep.subr.bf16.mxu0 0
        %1399 = vmatpush1.bf16.msra.mxu0 0
        %1400 = vmatprep.subr.bf16.mxu0 0
        %1401 = vmatpush1.bf16.msra.mxu0 0
        %1402 = vmatprep.subr.bf16.mxu0 0
        %1403 = vmatpush1.bf16.msra.mxu0 0
        %1404 = vmatprep.subr.bf16.mxu0 0
        %1405 = vmatpush1.bf16.msra.mxu0 0
        %1406 = vmatprep.subr.bf16.mxu0 0
        %1407 = vmatpush1.bf16.msra.mxu0 0
        %1408 = vmatprep.subr.bf16.mxu0 0
        %1409 = vmatpush1.bf16.msra.mxu0 0
        %1410 = vmatprep.subr.bf16.mxu0 0
        %1411 = vmatpush1.bf16.msra.mxu0 0
        %1412 = vmatprep.subr.bf16.mxu0 0
        %1413 = vmatpush1.bf16.msra.mxu0 0
        %1414 = vmatprep.subr.bf16.mxu0 0
        %1415 = vmatpush1.bf16.msra.mxu0 0
        %1416 = vmatprep.subr.bf16.mxu0 0
        %1417 = vmatpush1.bf16.msra.mxu0 0
        %1418 = vmatprep.subr.bf16.mxu0 0
        %1419 = vmatpush1.bf16.msra.mxu0 0
        %1420 = vmatprep.mubr.bf16.mxu0 0
        %1421 = vmatmul.mubr.bf16.gmra.mrb[0].mxu0 %v1383
        %v1422 = vpop.f32.mrb[0].mxu0
        %v1423 = vadd.f32 0.0, %v1422
        %v1424 = vpop.f32.mrb[0].mxu0
        %v1425 = vpop.f32.mrb[0].mxu0
        %v1426 = vpop.f32.mrb[0].mxu0
        %1427 = vdwg.mxu0
        %v1428 = vmax.f32 %v1423, 0.0
        %v1429 = vpack.c.bf16 %v1428, %v1428
        %s1430 = scalar_lea.vmem %s155, 360 [#allocation5]
        %v1431 = vld [vmem:[%s1430] sm:$0xf]
        %v1432 = vld [vmem:[%s1430 + $0x4] sm:$0xf]
        %v1433 = vld [vmem:[%s1430 + $0x8] sm:$0xf]
        %v1434 = vld [vmem:[%s1430 + $0xc] sm:$0xf]
        %v1435 = vld [vmem:[%s1430 + $0x10] sm:$0xf]
        %v1441 = vunpack.c.l.b16 %v1431
        %v1442 = vunpack.c.l.b16 %v1432
        %v1443 = vunpack.c.l.b16 %v1433
        %v1444 = vunpack.c.l.b16 %v1434
        %v1445 = vunpack.c.l.b16 %v1435
        %v1446 = vpack.c.b16 %v1442, %v1441
        %v1447 = vpack.c.b16 %v1444, %v1443
        %v1448 = vpack.c.b16 %v1445, %v1445
        %v1452 = vsel %vm200, %v1429, 0
        %v1455 = vsel %vm204, %v1448, 0
        %1457 = vmatprep.subr.bf16.mxu0 0
        %1458 = vmatpush1.bf16.msra.mxu0 %v1446
        %1459 = vmatprep.subr.bf16.mxu0 0
        %1460 = vmatpush1.bf16.msra.mxu0 %v1447
        %1461 = vmatprep.subr.bf16.mxu0 0
        %1462 = vmatpush1.bf16.msra.mxu0 %v1455
        %1463 = vmatprep.subr.bf16.mxu0 0
        %1464 = vmatpush1.bf16.msra.mxu0 0
        %1465 = vmatprep.subr.bf16.mxu0 0
        %1466 = vmatpush1.bf16.msra.mxu0 0
        %1467 = vmatprep.subr.bf16.mxu0 0
        %1468 = vmatpush1.bf16.msra.mxu0 0
        %1469 = vmatprep.subr.bf16.mxu0 0
        %1470 = vmatpush1.bf16.msra.mxu0 0
        %1471 = vmatprep.subr.bf16.mxu0 0
        %1472 = vmatpush1.bf16.msra.mxu0 0
        %1473 = vmatprep.subr.bf16.mxu0 0
        %1474 = vmatpush1.bf16.msra.mxu0 0
        %1475 = vmatprep.subr.bf16.mxu0 0
        %1476 = vmatpush1.bf16.msra.mxu0 0
        %1477 = vmatprep.subr.bf16.mxu0 0
        %1478 = vmatpush1.bf16.msra.mxu0 0
        %1479 = vmatprep.subr.bf16.mxu0 0
        %1480 = vmatpush1.bf16.msra.mxu0 0
        %1481 = vmatprep.subr.bf16.mxu0 0
        %1482 = vmatpush1.bf16.msra.mxu0 0
        %1483 = vmatprep.subr.bf16.mxu0 0
        %1484 = vmatpush1.bf16.msra.mxu0 0
        %1485 = vmatprep.subr.bf16.mxu0 0
        %1486 = vmatpush1.bf16.msra.mxu0 0
        %1487 = vmatprep.subr.bf16.mxu0 0
        %1488 = vmatpush1.bf16.msra.mxu0 0
        %1489 = vmatprep.mubr.bf16.mxu0 0
        %1490 = vmatmul.mubr.bf16.gmra.mrb[0].mxu0 %v1452
        %v1491 = vpop.f32.mrb[0].mxu0
        %v1492 = vadd.f32 0.0, %v1491
        %v1493 = vpop.f32.mrb[0].mxu0
        %v1494 = vpop.f32.mrb[0].mxu0
        %v1495 = vpop.f32.mrb[0].mxu0
        %1496 = vdwg.mxu0
        %v1497 = vmax.f32 %v1492, 0.0
        %v1498 = vpack.c.bf16 %v1497, %v1497
        %s1499 = scalar_lea.vmem %s155, 380 [#allocation5]
        %v1500 = vld [vmem:[%s1499] sm:$0xf]
        %v1501 = vld [vmem:[%s1499 + $0x4] sm:$0xf]
        %v1502 = vld [vmem:[%s1499 + $0x8] sm:$0xf]
        %v1503 = vld [vmem:[%s1499 + $0xc] sm:$0xf]
        %v1504 = vld [vmem:[%s1499 + $0x10] sm:$0xf]
        %v1510 = vunpack.c.l.b16 %v1500
        %v1511 = vunpack.c.l.b16 %v1501
        %v1512 = vunpack.c.l.b16 %v1502
        %v1513 = vunpack.c.l.b16 %v1503
        %v1514 = vunpack.c.l.b16 %v1504
        %v1515 = vpack.c.b16 %v1511, %v1510
        %v1516 = vpack.c.b16 %v1513, %v1512
        %v1517 = vpack.c.b16 %v1514, %v1514
        %v1521 = vsel %vm200, %v1498, 0
        %v1524 = vsel %vm204, %v1517, 0
        %1526 = vmatprep.subr.bf16.mxu0 0
        %1527 = vmatpush1.bf16.msra.mxu0 %v1515
        %1528 = vmatprep.subr.bf16.mxu0 0
        %1529 = vmatpush1.bf16.msra.mxu0 %v1516
        %1530 = vmatprep.subr.bf16.mxu0 0
        %1531 = vmatpush1.bf16.msra.mxu0 %v1524
        %1532 = vmatprep.subr.bf16.mxu0 0
        %1533 = vmatpush1.bf16.msra.mxu0 0
        %1534 = vmatprep.subr.bf16.mxu0 0
        %1535 = vmatpush1.bf16.msra.mxu0 0
        %1536 = vmatprep.subr.bf16.mxu0 0
        %1537 = vmatpush1.bf16.msra.mxu0 0
        %1538 = vmatprep.subr.bf16.mxu0 0
        %1539 = vmatpush1.bf16.msra.mxu0 0
        %1540 = vmatprep.subr.bf16.mxu0 0
        %1541 = vmatpush1.bf16.msra.mxu0 0
        %1542 = vmatprep.subr.bf16.mxu0 0
        %1543 = vmatpush1.bf16.msra.mxu0 0
        %1544 = vmatprep.subr.bf16.mxu0 0
        %1545 = vmatpush1.bf16.msra.mxu0 0
        %1546 = vmatprep.subr.bf16.mxu0 0
        %1547 = vmatpush1.bf16.msra.mxu0 0
        %1548 = vmatprep.subr.bf16.mxu0 0
        %1549 = vmatpush1.bf16.msra.mxu0 0
        %1550 = vmatprep.subr.bf16.mxu0 0
        %1551 = vmatpush1.bf16.msra.mxu0 0
        %1552 = vmatprep.subr.bf16.mxu0 0
        %1553 = vmatpush1.bf16.msra.mxu0 0
        %1554 = vmatprep.subr.bf16.mxu0 0
        %1555 = vmatpush1.bf16.msra.mxu0 0
        %1556 = vmatprep.subr.bf16.mxu0 0
        %1557 = vmatpush1.bf16.msra.mxu0 0
        %1558 = vmatprep.mubr.bf16.mxu0 0
        %1559 = vmatmul.mubr.bf16.gmra.mrb[0].mxu0 %v1521
        %v1560 = vpop.f32.mrb[0].mxu0
        %v1561 = vadd.f32 0.0, %v1560
        %v1562 = vpop.f32.mrb[0].mxu0
        %v1563 = vpop.f32.mrb[0].mxu0
        %v1564 = vpop.f32.mrb[0].mxu0
        %1565 = vdwg.mxu0
        %v1566 = vsub.f32 0.0, %v1561
        %v1567 = vmul.f32 %v1566, 1.442695
        %v1568 = vpow.pop %v1567
        %v1569 = vadd.f32 %v1568, 1.0
        %v1570 = vrcp.pop %v1569
        %s1571 = scalar_lea.vmem %s175, 32 [#allocation7]
        %1572 = vst [vmem:[%s1571] sm:$0xff] %v1570
        %s1573 = scalar_lea.vmem %s155, 400 [#allocation5]
        %v1574 = vld [vmem:[%s1573] sm:$0xf]
        %v1575 = vld [vmem:[%s1573 + $0x4] sm:$0xf]
        %v1576 = vld [vmem:[%s1573 + $0x8] sm:$0xf]
        %v1577 = vld [vmem:[%s1573 + $0xc] sm:$0xf]
        %v1578 = vld [vmem:[%s1573 + $0x10] sm:$0xf]
        %v1584 = vunpack.c.l.b16 %v1574
        %v1585 = vunpack.c.l.b16 %v1575
        %v1586 = vunpack.c.l.b16 %v1576
        %v1587 = vunpack.c.l.b16 %v1577
        %v1588 = vunpack.c.l.b16 %v1578
        %v1589 = vpack.c.b16 %v1585, %v1584
        %v1590 = vpack.c.b16 %v1587, %v1586
        %v1591 = vpack.c.b16 %v1588, %v1588
        %v1595 = vsel %vm204, %v1591, 0
        %1597 = vmatprep.subr.bf16.mxu0 0
        %1598 = vmatpush1.bf16.msra.mxu0 %v1589
        %1599 = vmatprep.subr.bf16.mxu0 0
        %1600 = vmatpush1.bf16.msra.mxu0 %v1590
        %1601 = vmatprep.subr.bf16.mxu0 0
        %1602 = vmatpush1.bf16.msra.mxu0 %v1595
        %1603 = vmatprep.subr.bf16.mxu0 0
        %1604 = vmatpush1.bf16.msra.mxu0 0
        %1605 = vmatprep.subr.bf16.mxu0 0
        %1606 = vmatpush1.bf16.msra.mxu0 0
        %1607 = vmatprep.subr.bf16.mxu0 0
        %1608 = vmatpush1.bf16.msra.mxu0 0
        %1609 = vmatprep.subr.bf16.mxu0 0
        %1610 = vmatpush1.bf16.msra.mxu0 0
        %1611 = vmatprep.subr.bf16.mxu0 0
        %1612 = vmatpush1.bf16.msra.mxu0 0
        %1613 = vmatprep.subr.bf16.mxu0 0
        %1614 = vmatpush1.bf16.msra.mxu0 0
        %1615 = vmatprep.subr.bf16.mxu0 0
        %1616 = vmatpush1.bf16.msra.mxu0 0
        %1617 = vmatprep.subr.bf16.mxu0 0
        %1618 = vmatpush1.bf16.msra.mxu0 0
        %1619 = vmatprep.subr.bf16.mxu0 0
        %1620 = vmatpush1.bf16.msra.mxu0 0
        %1621 = vmatprep.subr.bf16.mxu0 0
        %1622 = vmatpush1.bf16.msra.mxu0 0
        %1623 = vmatprep.subr.bf16.mxu0 0
        %1624 = vmatpush1.bf16.msra.mxu0 0
        %1625 = vmatprep.subr.bf16.mxu0 0
        %1626 = vmatpush1.bf16.msra.mxu0 0
        %1627 = vmatprep.subr.bf16.mxu0 0
        %1628 = vmatpush1.bf16.msra.mxu0 0
        %1629 = vmatprep.mubr.bf16.mxu0 0
        %1630 = vmatmul.mubr.bf16.gmra.mrb[0].mxu0 %v202
        %v1631 = vpop.f32.mrb[0].mxu0
        %v1632 = vadd.f32 0.0, %v1631
        %v1633 = vpop.f32.mrb[0].mxu0
        %v1634 = vpop.f32.mrb[0].mxu0
        %v1635 = vpop.f32.mrb[0].mxu0
        %1636 = vdwg.mxu0
        %v1637 = vmax.f32 %v1632, 0.0
        %v1638 = vpack.c.bf16 %v1637, %v1637
        %s1639 = scalar_lea.vmem %s155, 420 [#allocation5]
        %v1640 = vld [vmem:[%s1639] sm:$0xf]
        %v1641 = vld [vmem:[%s1639 + $0x4] sm:$0xf]
        %v1642 = vld [vmem:[%s1639 + $0x8] sm:$0xf]
        %v1643 = vld [vmem:[%s1639 + $0xc] sm:$0xf]
        %v1644 = vld [vmem:[%s1639 + $0x10] sm:$0xf]
        %v1650 = vunpack.c.l.b16 %v1640
        %v1651 = vunpack.c.l.b16 %v1641
        %v1652 = vunpack.c.l.b16 %v1642
        %v1653 = vunpack.c.l.b16 %v1643
        %v1654 = vunpack.c.l.b16 %v1644
        %v1655 = vpack.c.b16 %v1651, %v1650
        %v1656 = vpack.c.b16 %v1653, %v1652
        %v1657 = vpack.c.b16 %v1654, %v1654
        %v1661 = vsel %vm200, %v1638, 0
        %v1664 = vsel %vm204, %v1657, 0
        %1666 = vmatprep.subr.bf16.mxu0 0
        %1667 = vmatpush1.bf16.msra.mxu0 %v1655
        %1668 = vmatprep.subr.bf16.mxu0 0
        %1669 = vmatpush1.bf16.msra.mxu0 %v1656
        %1670 = vmatprep.subr.bf16.mxu0 0
        %1671 = vmatpush1.bf16.msra.mxu0 %v1664
        %1672 = vmatprep.subr.bf16.mxu0 0
        %1673 = vmatpush1.bf16.msra.mxu0 0
        %1674 = vmatprep.subr.bf16.mxu0 0
        %1675 = vmatpush1.bf16.msra.mxu0 0
        %1676 = vmatprep.subr.bf16.mxu0 0
        %1677 = vmatpush1.bf16.msra.mxu0 0
        %1678 = vmatprep.subr.bf16.mxu0 0
        %1679 = vmatpush1.bf16.msra.mxu0 0
        %1680 = vmatprep.subr.bf16.mxu0 0
        %1681 = vmatpush1.bf16.msra.mxu0 0
        %1682 = vmatprep.subr.bf16.mxu0 0
        %1683 = vmatpush1.bf16.msra.mxu0 0
        %1684 = vmatprep.subr.bf16.mxu0 0
        %1685 = vmatpush1.bf16.msra.mxu0 0
        %1686 = vmatprep.subr.bf16.mxu0 0
        %1687 = vmatpush1.bf16.msra.mxu0 0
        %1688 = vmatprep.subr.bf16.mxu0 0
        %1689 = vmatpush1.bf16.msra.mxu0 0
        %1690 = vmatprep.subr.bf16.mxu0 0
        %1691 = vmatpush1.bf16.msra.mxu0 0
        %1692 = vmatprep.subr.bf16.mxu0 0
        %1693 = vmatpush1.bf16.msra.mxu0 0
        %1694 = vmatprep.subr.bf16.mxu0 0
        %1695 = vmatpush1.bf16.msra.mxu0 0
        %1696 = vmatprep.subr.bf16.mxu0 0
        %1697 = vmatpush1.bf16.msra.mxu0 0
        %1698 = vmatprep.mubr.bf16.mxu0 0
        %1699 = vmatmul.mubr.bf16.gmra.mrb[0].mxu0 %v1661
        %v1700 = vpop.f32.mrb[0].mxu0
        %v1701 = vadd.f32 0.0, %v1700
        %v1702 = vpop.f32.mrb[0].mxu0
        %v1703 = vpop.f32.mrb[0].mxu0
        %v1704 = vpop.f32.mrb[0].mxu0
        %1705 = vdwg.mxu0
        %v1706 = vmax.f32 %v1701, 0.0
        %v1707 = vpack.c.bf16 %v1706, %v1706
        %s1708 = scalar_lea.vmem %s155, 440 [#allocation5]
        %v1709 = vld [vmem:[%s1708] sm:$0xf]
        %v1710 = vld [vmem:[%s1708 + $0x4] sm:$0xf]
        %v1711 = vld [vmem:[%s1708 + $0x8] sm:$0xf]
        %v1712 = vld [vmem:[%s1708 + $0xc] sm:$0xf]
        %v1713 = vld [vmem:[%s1708 + $0x10] sm:$0xf]
        %v1719 = vunpack.c.l.b16 %v1709
        %v1720 = vunpack.c.l.b16 %v1710
        %v1721 = vunpack.c.l.b16 %v1711
        %v1722 = vunpack.c.l.b16 %v1712
        %v1723 = vunpack.c.l.b16 %v1713
        %v1724 = vpack.c.b16 %v1720, %v1719
        %v1725 = vpack.c.b16 %v1722, %v1721
        %v1726 = vpack.c.b16 %v1723, %v1723
        %v1730 = vsel %vm200, %v1707, 0
        %v1733 = vsel %vm204, %v1726, 0
        %1735 = vmatprep.subr.bf16.mxu0 0
        %1736 = vmatpush1.bf16.msra.mxu0 %v1724
        %1737 = vmatprep.subr.bf16.mxu0 0
        %1738 = vmatpush1.bf16.msra.mxu0 %v1725
        %1739 = vmatprep.subr.bf16.mxu0 0
        %1740 = vmatpush1.bf16.msra.mxu0 %v1733
        %1741 = vmatprep.subr.bf16.mxu0 0
        %1742 = vmatpush1.bf16.msra.mxu0 0
        %1743 = vmatprep.subr.bf16.mxu0 0
        %1744 = vmatpush1.bf16.msra.mxu0 0
        %1745 = vmatprep.subr.bf16.mxu0 0
        %1746 = vmatpush1.bf16.msra.mxu0 0
        %1747 = vmatprep.subr.bf16.mxu0 0
        %1748 = vmatpush1.bf16.msra.mxu0 0
        %1749 = vmatprep.subr.bf16.mxu0 0
        %1750 = vmatpush1.bf16.msra.mxu0 0
        %1751 = vmatprep.subr.bf16.mxu0 0
        %1752 = vmatpush1.bf16.msra.mxu0 0
        %1753 = vmatprep.subr.bf16.mxu0 0
        %1754 = vmatpush1.bf16.msra.mxu0 0
        %1755 = vmatprep.subr.bf16.mxu0 0
        %1756 = vmatpush1.bf16.msra.mxu0 0
        %1757 = vmatprep.subr.bf16.mxu0 0
        %1758 = vmatpush1.bf16.msra.mxu0 0
        %1759 = vmatprep.subr.bf16.mxu0 0
        %1760 = vmatpush1.bf16.msra.mxu0 0
        %1761 = vmatprep.subr.bf16.mxu0 0
        %1762 = vmatpush1.bf16.msra.mxu0 0
        %1763 = vmatprep.subr.bf16.mxu0 0
        %1764 = vmatpush1.bf16.msra.mxu0 0
        %1765 = vmatprep.subr.bf16.mxu0 0
        %1766 = vmatpush1.bf16.msra.mxu0 0
        %1767 = vmatprep.mubr.bf16.mxu0 0
        %1768 = vmatmul.mubr.bf16.gmra.mrb[0].mxu0 %v1730
        %v1769 = vpop.f32.mrb[0].mxu0
        %v1770 = vadd.f32 0.0, %v1769
        %v1771 = vpop.f32.mrb[0].mxu0
        %v1772 = vpop.f32.mrb[0].mxu0
        %v1773 = vpop.f32.mrb[0].mxu0
        %1774 = vdwg.mxu0
        %v1775 = vmax.f32 %v1770, 0.0
        %v1776 = vpack.c.bf16 %v1775, %v1775
        %s1777 = scalar_lea.vmem %s155, 460 [#allocation5]
        %v1778 = vld [vmem:[%s1777] sm:$0xf]
        %v1779 = vld [vmem:[%s1777 + $0x4] sm:$0xf]
        %v1780 = vld [vmem:[%s1777 + $0x8] sm:$0xf]
        %v1781 = vld [vmem:[%s1777 + $0xc] sm:$0xf]
        %v1782 = vld [vmem:[%s1777 + $0x10] sm:$0xf]
        %v1788 = vunpack.c.l.b16 %v1778
        %v1789 = vunpack.c.l.b16 %v1779
        %v1790 = vunpack.c.l.b16 %v1780
        %v1791 = vunpack.c.l.b16 %v1781
        %v1792 = vunpack.c.l.b16 %v1782
        %v1793 = vpack.c.b16 %v1789, %v1788
        %v1794 = vpack.c.b16 %v1791, %v1790
        %v1795 = vpack.c.b16 %v1792, %v1792
        %v1799 = vsel %vm200, %v1776, 0
        %v1802 = vsel %vm204, %v1795, 0
        %1804 = vmatprep.subr.bf16.mxu0 0
        %1805 = vmatpush1.bf16.msra.mxu0 %v1793
        %1806 = vmatprep.subr.bf16.mxu0 0
        %1807 = vmatpush1.bf16.msra.mxu0 %v1794
        %1808 = vmatprep.subr.bf16.mxu0 0
        %1809 = vmatpush1.bf16.msra.mxu0 %v1802
        %1810 = vmatprep.subr.bf16.mxu0 0
        %1811 = vmatpush1.bf16.msra.mxu0 0
        %1812 = vmatprep.subr.bf16.mxu0 0
        %1813 = vmatpush1.bf16.msra.mxu0 0
        %1814 = vmatprep.subr.bf16.mxu0 0
        %1815 = vmatpush1.bf16.msra.mxu0 0
        %1816 = vmatprep.subr.bf16.mxu0 0
        %1817 = vmatpush1.bf16.msra.mxu0 0
        %1818 = vmatprep.subr.bf16.mxu0 0
        %1819 = vmatpush1.bf16.msra.mxu0 0
        %1820 = vmatprep.subr.bf16.mxu0 0
        %1821 = vmatpush1.bf16.msra.mxu0 0
        %1822 = vmatprep.subr.bf16.mxu0 0
        %1823 = vmatpush1.bf16.msra.mxu0 0
        %1824 = vmatprep.subr.bf16.mxu0 0
        %1825 = vmatpush1.bf16.msra.mxu0 0
        %1826 = vmatprep.subr.bf16.mxu0 0
        %1827 = vmatpush1.bf16.msra.mxu0 0
        %1828 = vmatprep.subr.bf16.mxu0 0
        %1829 = vmatpush1.bf16.msra.mxu0 0
        %1830 = vmatprep.subr.bf16.mxu0 0
        %1831 = vmatpush1.bf16.msra.mxu0 0
        %1832 = vmatprep.subr.bf16.mxu0 0
        %1833 = vmatpush1.bf16.msra.mxu0 0
        %1834 = vmatprep.subr.bf16.mxu0 0
        %1835 = vmatpush1.bf16.msra.mxu0 0
        %1836 = vmatprep.mubr.bf16.mxu0 0
        %1837 = vmatmul.mubr.bf16.gmra.mrb[0].mxu0 %v1799
        %v1838 = vpop.f32.mrb[0].mxu0
        %v1839 = vadd.f32 0.0, %v1838
        %v1840 = vpop.f32.mrb[0].mxu0
        %v1841 = vpop.f32.mrb[0].mxu0
        %v1842 = vpop.f32.mrb[0].mxu0
        %1843 = vdwg.mxu0
        %v1844 = vsub.f32 0.0, %v1839
        %v1845 = vmul.f32 %v1844, 1.442695
        %v1846 = vpow.pop %v1845
        %v1847 = vadd.f32 %v1846, 1.0
        %v1848 = vrcp.pop %v1847
        %s1849 = scalar_lea.vmem %s175, 40 [#allocation7]
        %1850 = vst [vmem:[%s1849] sm:$0xff] %v1848
        %s1851 = scalar_lea.vmem %s155, 480 [#allocation5]
        %v1852 = vld [vmem:[%s1851] sm:$0xf]
        %v1853 = vld [vmem:[%s1851 + $0x4] sm:$0xf]
        %v1854 = vld [vmem:[%s1851 + $0x8] sm:$0xf]
        %v1855 = vld [vmem:[%s1851 + $0xc] sm:$0xf]
        %v1856 = vld [vmem:[%s1851 + $0x10] sm:$0xf]
        %v1862 = vunpack.c.l.b16 %v1852
        %v1863 = vunpack.c.l.b16 %v1853
        %v1864 = vunpack.c.l.b16 %v1854
        %v1865 = vunpack.c.l.b16 %v1855
        %v1866 = vunpack.c.l.b16 %v1856
        %v1867 = vpack.c.b16 %v1863, %v1862
        %v1868 = vpack.c.b16 %v1865, %v1864
        %v1869 = vpack.c.b16 %v1866, %v1866
        %v1873 = vsel %vm204, %v1869, 0
        %1875 = vmatprep.subr.bf16.mxu0 0
        %1876 = vmatpush1.bf16.msra.mxu0 %v1867
        %1877 = vmatprep.subr.bf16.mxu0 0
        %1878 = vmatpush1.bf16.msra.mxu0 %v1868
        %1879 = vmatprep.subr.bf16.mxu0 0
        %1880 = vmatpush1.bf16.msra.mxu0 %v1873
        %1881 = vmatprep.subr.bf16.mxu0 0
        %1882 = vmatpush1.bf16.msra.mxu0 0
        %1883 = vmatprep.subr.bf16.mxu0 0
        %1884 = vmatpush1.bf16.msra.mxu0 0
        %1885 = vmatprep.subr.bf16.mxu0 0
        %1886 = vmatpush1.bf16.msra.mxu0 0
        %1887 = vmatprep.subr.bf16.mxu0 0
        %1888 = vmatpush1.bf16.msra.mxu0 0
        %1889 = vmatprep.subr.bf16.mxu0 0
        %1890 = vmatpush1.bf16.msra.mxu0 0
        %1891 = vmatprep.subr.bf16.mxu0 0
        %1892 = vmatpush1.bf16.msra.mxu0 0
        %1893 = vmatprep.subr.bf16.mxu0 0
        %1894 = vmatpush1.bf16.msra.mxu0 0
        %1895 = vmatprep.subr.bf16.mxu0 0
        %1896 = vmatpush1.bf16.msra.mxu0 0
        %1897 = vmatprep.subr.bf16.mxu0 0
        %1898 = vmatpush1.bf16.msra.mxu0 0
        %1899 = vmatprep.subr.bf16.mxu0 0
        %1900 = vmatpush1.bf16.msra.mxu0 0
        %1901 = vmatprep.subr.bf16.mxu0 0
        %1902 = vmatpush1.bf16.msra.mxu0 0
        %1903 = vmatprep.subr.bf16.mxu0 0
        %1904 = vmatpush1.bf16.msra.mxu0 0
        %1905 = vmatprep.subr.bf16.mxu0 0
        %1906 = vmatpush1.bf16.msra.mxu0 0
        %1907 = vmatprep.mubr.bf16.mxu0 0
        %1908 = vmatmul.mubr.bf16.gmra.mrb[0].mxu0 %v202
        %v1909 = vpop.f32.mrb[0].mxu0
        %v1910 = vadd.f32 0.0, %v1909
        %v1911 = vpop.f32.mrb[0].mxu0
        %v1912 = vpop.f32.mrb[0].mxu0
        %v1913 = vpop.f32.mrb[0].mxu0
        %1914 = vdwg.mxu0
        %v1915 = vmax.f32 %v1910, 0.0
        %v1916 = vpack.c.bf16 %v1915, %v1915
        %s1917 = scalar_lea.vmem %s155, 500 [#allocation5]
        %v1918 = vld [vmem:[%s1917] sm:$0xf]
        %v1919 = vld [vmem:[%s1917 + $0x4] sm:$0xf]
        %v1920 = vld [vmem:[%s1917 + $0x8] sm:$0xf]
        %v1921 = vld [vmem:[%s1917 + $0xc] sm:$0xf]
        %v1922 = vld [vmem:[%s1917 + $0x10] sm:$0xf]
        %v1928 = vunpack.c.l.b16 %v1918
        %v1929 = vunpack.c.l.b16 %v1919
        %v1930 = vunpack.c.l.b16 %v1920
        %v1931 = vunpack.c.l.b16 %v1921
        %v1932 = vunpack.c.l.b16 %v1922
        %v1933 = vpack.c.b16 %v1929, %v1928
        %v1934 = vpack.c.b16 %v1931, %v1930
        %v1935 = vpack.c.b16 %v1932, %v1932
        %v1939 = vsel %vm200, %v1916, 0
        %v1942 = vsel %vm204, %v1935, 0
        %1944 = vmatprep.subr.bf16.mxu0 0
        %1945 = vmatpush1.bf16.msra.mxu0 %v1933
        %1946 = vmatprep.subr.bf16.mxu0 0
        %1947 = vmatpush1.bf16.msra.mxu0 %v1934
        %1948 = vmatprep.subr.bf16.mxu0 0
        %1949 = vmatpush1.bf16.msra.mxu0 %v1942
        %1950 = vmatprep.subr.bf16.mxu0 0
        %1951 = vmatpush1.bf16.msra.mxu0 0
        %1952 = vmatprep.subr.bf16.mxu0 0
        %1953 = vmatpush1.bf16.msra.mxu0 0
        %1954 = vmatprep.subr.bf16.mxu0 0
        %1955 = vmatpush1.bf16.msra.mxu0 0
        %1956 = vmatprep.subr.bf16.mxu0 0
        %1957 = vmatpush1.bf16.msra.mxu0 0
        %1958 = vmatprep.subr.bf16.mxu0 0
        %1959 = vmatpush1.bf16.msra.mxu0 0
        %1960 = vmatprep.subr.bf16.mxu0 0
        %1961 = vmatpush1.bf16.msra.mxu0 0
        %1962 = vmatprep.subr.bf16.mxu0 0
        %1963 = vmatpush1.bf16.msra.mxu0 0
        %1964 = vmatprep.subr.bf16.mxu0 0
        %1965 = vmatpush1.bf16.msra.mxu0 0
        %1966 = vmatprep.subr.bf16.mxu0 0
        %1967 = vmatpush1.bf16.msra.mxu0 0
        %1968 = vmatprep.subr.bf16.mxu0 0
        %1969 = vmatpush1.bf16.msra.mxu0 0
        %1970 = vmatprep.subr.bf16.mxu0 0
        %1971 = vmatpush1.bf16.msra.mxu0 0
        %1972 = vmatprep.subr.bf16.mxu0 0
        %1973 = vmatpush1.bf16.msra.mxu0 0
        %1974 = vmatprep.subr.bf16.mxu0 0
        %1975 = vmatpush1.bf16.msra.mxu0 0
        %1976 = vmatprep.mubr.bf16.mxu0 0
        %1977 = vmatmul.mubr.bf16.gmra.mrb[0].mxu0 %v1939
        %v1978 = vpop.f32.mrb[0].mxu0
        %v1979 = vadd.f32 0.0, %v1978
        %v1980 = vpop.f32.mrb[0].mxu0
        %v1981 = vpop.f32.mrb[0].mxu0
        %v1982 = vpop.f32.mrb[0].mxu0
        %1983 = vdwg.mxu0
        %v1984 = vmax.f32 %v1979, 0.0
        %v1985 = vpack.c.bf16 %v1984, %v1984
        %s1986 = scalar_lea.vmem %s155, 520 [#allocation5]
        %v1987 = vld [vmem:[%s1986] sm:$0xf]
        %v1988 = vld [vmem:[%s1986 + $0x4] sm:$0xf]
        %v1989 = vld [vmem:[%s1986 + $0x8] sm:$0xf]
        %v1990 = vld [vmem:[%s1986 + $0xc] sm:$0xf]
        %v1991 = vld [vmem:[%s1986 + $0x10] sm:$0xf]
        %v1997 = vunpack.c.l.b16 %v1987
        %v1998 = vunpack.c.l.b16 %v1988
        %v1999 = vunpack.c.l.b16 %v1989
        %v2000 = vunpack.c.l.b16 %v1990
        %v2001 = vunpack.c.l.b16 %v1991
        %v2002 = vpack.c.b16 %v1998, %v1997
        %v2003 = vpack.c.b16 %v2000, %v1999
        %v2004 = vpack.c.b16 %v2001, %v2001
        %v2008 = vsel %vm200, %v1985, 0
        %v2011 = vsel %vm204, %v2004, 0
        %2013 = vmatprep.subr.bf16.mxu0 0
        %2014 = vmatpush1.bf16.msra.mxu0 %v2002
        %2015 = vmatprep.subr.bf16.mxu0 0
        %2016 = vmatpush1.bf16.msra.mxu0 %v2003
        %2017 = vmatprep.subr.bf16.mxu0 0
        %2018 = vmatpush1.bf16.msra.mxu0 %v2011
        %2019 = vmatprep.subr.bf16.mxu0 0
        %2020 = vmatpush1.bf16.msra.mxu0 0
        %2021 = vmatprep.subr.bf16.mxu0 0
        %2022 = vmatpush1.bf16.msra.mxu0 0
        %2023 = vmatprep.subr.bf16.mxu0 0
        %2024 = vmatpush1.bf16.msra.mxu0 0
        %2025 = vmatprep.subr.bf16.mxu0 0
        %2026 = vmatpush1.bf16.msra.mxu0 0
        %2027 = vmatprep.subr.bf16.mxu0 0
        %2028 = vmatpush1.bf16.msra.mxu0 0
        %2029 = vmatprep.subr.bf16.mxu0 0
        %2030 = vmatpush1.bf16.msra.mxu0 0
        %2031 = vmatprep.subr.bf16.mxu0 0
        %2032 = vmatpush1.bf16.msra.mxu0 0
        %2033 = vmatprep.subr.bf16.mxu0 0
        %2034 = vmatpush1.bf16.msra.mxu0 0
        %2035 = vmatprep.subr.bf16.mxu0 0
        %2036 = vmatpush1.bf16.msra.mxu0 0
        %2037 = vmatprep.subr.bf16.mxu0 0
        %2038 = vmatpush1.bf16.msra.mxu0 0
        %2039 = vmatprep.subr.bf16.mxu0 0
        %2040 = vmatpush1.bf16.msra.mxu0 0
        %2041 = vmatprep.subr.bf16.mxu0 0
        %2042 = vmatpush1.bf16.msra.mxu0 0
        %2043 = vmatprep.subr.bf16.mxu0 0
        %2044 = vmatpush1.bf16.msra.mxu0 0
        %2045 = vmatprep.mubr.bf16.mxu0 0
        %2046 = vmatmul.mubr.bf16.gmra.mrb[0].mxu0 %v2008
        %v2047 = vpop.f32.mrb[0].mxu0
        %v2048 = vadd.f32 0.0, %v2047
        %v2049 = vpop.f32.mrb[0].mxu0
        %v2050 = vpop.f32.mrb[0].mxu0
        %v2051 = vpop.f32.mrb[0].mxu0
        %2052 = vdwg.mxu0
        %v2053 = vmax.f32 %v2048, 0.0
        %v2054 = vpack.c.bf16 %v2053, %v2053
        %s2055 = scalar_lea.vmem %s155, 540 [#allocation5]
        %v2056 = vld [vmem:[%s2055] sm:$0xf]
        %v2057 = vld [vmem:[%s2055 + $0x4] sm:$0xf]
        %v2058 = vld [vmem:[%s2055 + $0x8] sm:$0xf]
        %v2059 = vld [vmem:[%s2055 + $0xc] sm:$0xf]
        %v2060 = vld [vmem:[%s2055 + $0x10] sm:$0xf]
        %v2066 = vunpack.c.l.b16 %v2056
        %v2067 = vunpack.c.l.b16 %v2057
        %v2068 = vunpack.c.l.b16 %v2058
        %v2069 = vunpack.c.l.b16 %v2059
        %v2070 = vunpack.c.l.b16 %v2060
        %v2071 = vpack.c.b16 %v2067, %v2066
        %v2072 = vpack.c.b16 %v2069, %v2068
        %v2073 = vpack.c.b16 %v2070, %v2070
        %v2077 = vsel %vm200, %v2054, 0
        %v2080 = vsel %vm204, %v2073, 0
        %2082 = vmatprep.subr.bf16.mxu0 0
        %2083 = vmatpush1.bf16.msra.mxu0 %v2071
        %2084 = vmatprep.subr.bf16.mxu0 0
        %2085 = vmatpush1.bf16.msra.mxu0 %v2072
        %2086 = vmatprep.subr.bf16.mxu0 0
        %2087 = vmatpush1.bf16.msra.mxu0 %v2080
        %2088 = vmatprep.subr.bf16.mxu0 0
        %2089 = vmatpush1.bf16.msra.mxu0 0
        %2090 = vmatprep.subr.bf16.mxu0 0
        %2091 = vmatpush1.bf16.msra.mxu0 0
        %2092 = vmatprep.subr.bf16.mxu0 0
        %2093 = vmatpush1.bf16.msra.mxu0 0
        %2094 = vmatprep.subr.bf16.mxu0 0
        %2095 = vmatpush1.bf16.msra.mxu0 0
        %2096 = vmatprep.subr.bf16.mxu0 0
        %2097 = vmatpush1.bf16.msra.mxu0 0
        %2098 = vmatprep.subr.bf16.mxu0 0
        %2099 = vmatpush1.bf16.msra.mxu0 0
        %2100 = vmatprep.subr.bf16.mxu0 0
        %2101 = vmatpush1.bf16.msra.mxu0 0
        %2102 = vmatprep.subr.bf16.mxu0 0
        %2103 = vmatpush1.bf16.msra.mxu0 0
        %2104 = vmatprep.subr.bf16.mxu0 0
        %2105 = vmatpush1.bf16.msra.mxu0 0
        %2106 = vmatprep.subr.bf16.mxu0 0
        %2107 = vmatpush1.bf16.msra.mxu0 0
        %2108 = vmatprep.subr.bf16.mxu0 0
        %2109 = vmatpush1.bf16.msra.mxu0 0
        %2110 = vmatprep.subr.bf16.mxu0 0
        %2111 = vmatpush1.bf16.msra.mxu0 0
        %2112 = vmatprep.subr.bf16.mxu0 0
        %2113 = vmatpush1.bf16.msra.mxu0 0
        %2114 = vmatprep.mubr.bf16.mxu0 0
        %2115 = vmatmul.mubr.bf16.gmra.mrb[0].mxu0 %v2077
        %v2116 = vpop.f32.mrb[0].mxu0
        %v2117 = vadd.f32 0.0, %v2116
        %v2118 = vpop.f32.mrb[0].mxu0
        %v2119 = vpop.f32.mrb[0].mxu0
        %v2120 = vpop.f32.mrb[0].mxu0
        %2121 = vdwg.mxu0
        %v2122 = vsub.f32 0.0, %v2117
        %v2123 = vmul.f32 %v2122, 1.442695
        %v2124 = vpow.pop %v2123
        %v2125 = vadd.f32 %v2124, 1.0
        %v2126 = vrcp.pop %v2125
        %s2127 = scalar_lea.vmem %s175, 48 [#allocation7]
        %2128 = vst [vmem:[%s2127] sm:$0xff] %v2126
        %s2129 = scalar_lea.vmem %s155, 560 [#allocation5]
        %v2130 = vld [vmem:[%s2129] sm:$0xf]
        %v2131 = vld [vmem:[%s2129 + $0x4] sm:$0xf]
        %v2132 = vld [vmem:[%s2129 + $0x8] sm:$0xf]
        %v2133 = vld [vmem:[%s2129 + $0xc] sm:$0xf]
        %v2134 = vld [vmem:[%s2129 + $0x10] sm:$0xf]
        %v2140 = vunpack.c.l.b16 %v2130
        %v2141 = vunpack.c.l.b16 %v2131
        %v2142 = vunpack.c.l.b16 %v2132
        %v2143 = vunpack.c.l.b16 %v2133
        %v2144 = vunpack.c.l.b16 %v2134
        %v2145 = vpack.c.b16 %v2141, %v2140
        %v2146 = vpack.c.b16 %v2143, %v2142
        %v2147 = vpack.c.b16 %v2144, %v2144
        %v2151 = vsel %vm204, %v2147, 0
        %2153 = vmatprep.subr.bf16.mxu0 0
        %2154 = vmatpush1.bf16.msra.mxu0 %v2145
        %2155 = vmatprep.subr.bf16.mxu0 0
        %2156 = vmatpush1.bf16.msra.mxu0 %v2146
        %2157 = vmatprep.subr.bf16.mxu0 0
        %2158 = vmatpush1.bf16.msra.mxu0 %v2151
        %2159 = vmatprep.subr.bf16.mxu0 0
        %2160 = vmatpush1.bf16.msra.mxu0 0
        %2161 = vmatprep.subr.bf16.mxu0 0
        %2162 = vmatpush1.bf16.msra.mxu0 0
        %2163 = vmatprep.subr.bf16.mxu0 0
        %2164 = vmatpush1.bf16.msra.mxu0 0
        %2165 = vmatprep.subr.bf16.mxu0 0
        %2166 = vmatpush1.bf16.msra.mxu0 0
        %2167 = vmatprep.subr.bf16.mxu0 0
        %2168 = vmatpush1.bf16.msra.mxu0 0
        %2169 = vmatprep.subr.bf16.mxu0 0
        %2170 = vmatpush1.bf16.msra.mxu0 0
        %2171 = vmatprep.subr.bf16.mxu0 0
        %2172 = vmatpush1.bf16.msra.mxu0 0
        %2173 = vmatprep.subr.bf16.mxu0 0
        %2174 = vmatpush1.bf16.msra.mxu0 0
        %2175 = vmatprep.subr.bf16.mxu0 0
        %2176 = vmatpush1.bf16.msra.mxu0 0
        %2177 = vmatprep.subr.bf16.mxu0 0
        %2178 = vmatpush1.bf16.msra.mxu0 0
        %2179 = vmatprep.subr.bf16.mxu0 0
        %2180 = vmatpush1.bf16.msra.mxu0 0
        %2181 = vmatprep.subr.bf16.mxu0 0
        %2182 = vmatpush1.bf16.msra.mxu0 0
        %2183 = vmatprep.subr.bf16.mxu0 0
        %2184 = vmatpush1.bf16.msra.mxu0 0
        %2185 = vmatprep.mubr.bf16.mxu0 0
        %2186 = vmatmul.mubr.bf16.gmra.mrb[0].mxu0 %v202
        %v2187 = vpop.f32.mrb[0].mxu0
        %v2188 = vadd.f32 0.0, %v2187
        %v2189 = vpop.f32.mrb[0].mxu0
        %v2190 = vpop.f32.mrb[0].mxu0
        %v2191 = vpop.f32.mrb[0].mxu0
        %2192 = vdwg.mxu0
        %v2193 = vmax.f32 %v2188, 0.0
        %v2194 = vpack.c.bf16 %v2193, %v2193
        %s2195 = scalar_lea.vmem %s155, 580 [#allocation5]
        %v2196 = vld [vmem:[%s2195] sm:$0xf]
        %v2197 = vld [vmem:[%s2195 + $0x4] sm:$0xf]
        %v2198 = vld [vmem:[%s2195 + $0x8] sm:$0xf]
        %v2199 = vld [vmem:[%s2195 + $0xc] sm:$0xf]
        %v2200 = vld [vmem:[%s2195 + $0x10] sm:$0xf]
        %v2206 = vunpack.c.l.b16 %v2196
        %v2207 = vunpack.c.l.b16 %v2197
        %v2208 = vunpack.c.l.b16 %v2198
        %v2209 = vunpack.c.l.b16 %v2199
        %v2210 = vunpack.c.l.b16 %v2200
        %v2211 = vpack.c.b16 %v2207, %v2206
        %v2212 = vpack.c.b16 %v2209, %v2208
        %v2213 = vpack.c.b16 %v2210, %v2210
        %v2217 = vsel %vm200, %v2194, 0
        %v2220 = vsel %vm204, %v2213, 0
        %2222 = vmatprep.subr.bf16.mxu0 0
        %2223 = vmatpush1.bf16.msra.mxu0 %v2211
        %2224 = vmatprep.subr.bf16.mxu0 0
        %2225 = vmatpush1.bf16.msra.mxu0 %v2212
        %2226 = vmatprep.subr.bf16.mxu0 0
        %2227 = vmatpush1.bf16.msra.mxu0 %v2220
        %2228 = vmatprep.subr.bf16.mxu0 0
        %2229 = vmatpush1.bf16.msra.mxu0 0
        %2230 = vmatprep.subr.bf16.mxu0 0
        %2231 = vmatpush1.bf16.msra.mxu0 0
        %2232 = vmatprep.subr.bf16.mxu0 0
        %2233 = vmatpush1.bf16.msra.mxu0 0
        %2234 = vmatprep.subr.bf16.mxu0 0
        %2235 = vmatpush1.bf16.msra.mxu0 0
        %2236 = vmatprep.subr.bf16.mxu0 0
        %2237 = vmatpush1.bf16.msra.mxu0 0
        %2238 = vmatprep.subr.bf16.mxu0 0
        %2239 = vmatpush1.bf16.msra.mxu0 0
        %2240 = vmatprep.subr.bf16.mxu0 0
        %2241 = vmatpush1.bf16.msra.mxu0 0
        %2242 = vmatprep.subr.bf16.mxu0 0
        %2243 = vmatpush1.bf16.msra.mxu0 0
        %2244 = vmatprep.subr.bf16.mxu0 0
        %2245 = vmatpush1.bf16.msra.mxu0 0
        %2246 = vmatprep.subr.bf16.mxu0 0
        %2247 = vmatpush1.bf16.msra.mxu0 0
        %2248 = vmatprep.subr.bf16.mxu0 0
        %2249 = vmatpush1.bf16.msra.mxu0 0
        %2250 = vmatprep.subr.bf16.mxu0 0
        %2251 = vmatpush1.bf16.msra.mxu0 0
        %2252 = vmatprep.subr.bf16.mxu0 0
        %2253 = vmatpush1.bf16.msra.mxu0 0
        %2254 = vmatprep.mubr.bf16.mxu0 0
        %2255 = vmatmul.mubr.bf16.gmra.mrb[0].mxu0 %v2217
        %v2256 = vpop.f32.mrb[0].mxu0
        %v2257 = vadd.f32 0.0, %v2256
        %v2258 = vpop.f32.mrb[0].mxu0
        %v2259 = vpop.f32.mrb[0].mxu0
        %v2260 = vpop.f32.mrb[0].mxu0
        %2261 = vdwg.mxu0
        %v2262 = vmax.f32 %v2257, 0.0
        %v2263 = vpack.c.bf16 %v2262, %v2262
        %s2264 = scalar_lea.vmem %s155, 600 [#allocation5]
        %v2265 = vld [vmem:[%s2264] sm:$0xf]
        %v2266 = vld [vmem:[%s2264 + $0x4] sm:$0xf]
        %v2267 = vld [vmem:[%s2264 + $0x8] sm:$0xf]
        %v2268 = vld [vmem:[%s2264 + $0xc] sm:$0xf]
        %v2269 = vld [vmem:[%s2264 + $0x10] sm:$0xf]
        %v2275 = vunpack.c.l.b16 %v2265
        %v2276 = vunpack.c.l.b16 %v2266
        %v2277 = vunpack.c.l.b16 %v2267
        %v2278 = vunpack.c.l.b16 %v2268
        %v2279 = vunpack.c.l.b16 %v2269
        %v2280 = vpack.c.b16 %v2276, %v2275
        %v2281 = vpack.c.b16 %v2278, %v2277
        %v2282 = vpack.c.b16 %v2279, %v2279
        %v2286 = vsel %vm200, %v2263, 0
        %v2289 = vsel %vm204, %v2282, 0
        %2291 = vmatprep.subr.bf16.mxu0 0
        %2292 = vmatpush1.bf16.msra.mxu0 %v2280
        %2293 = vmatprep.subr.bf16.mxu0 0
        %2294 = vmatpush1.bf16.msra.mxu0 %v2281
        %2295 = vmatprep.subr.bf16.mxu0 0
        %2296 = vmatpush1.bf16.msra.mxu0 %v2289
        %2297 = vmatprep.subr.bf16.mxu0 0
        %2298 = vmatpush1.bf16.msra.mxu0 0
        %2299 = vmatprep.subr.bf16.mxu0 0
        %2300 = vmatpush1.bf16.msra.mxu0 0
        %2301 = vmatprep.subr.bf16.mxu0 0
        %2302 = vmatpush1.bf16.msra.mxu0 0
        %2303 = vmatprep.subr.bf16.mxu0 0
        %2304 = vmatpush1.bf16.msra.mxu0 0
        %2305 = vmatprep.subr.bf16.mxu0 0
        %2306 = vmatpush1.bf16.msra.mxu0 0
        %2307 = vmatprep.subr.bf16.mxu0 0
        %2308 = vmatpush1.bf16.msra.mxu0 0
        %2309 = vmatprep.subr.bf16.mxu0 0
        %2310 = vmatpush1.bf16.msra.mxu0 0
        %2311 = vmatprep.subr.bf16.mxu0 0
        %2312 = vmatpush1.bf16.msra.mxu0 0
        %2313 = vmatprep.subr.bf16.mxu0 0
        %2314 = vmatpush1.bf16.msra.mxu0 0
        %2315 = vmatprep.subr.bf16.mxu0 0
        %2316 = vmatpush1.bf16.msra.mxu0 0
        %2317 = vmatprep.subr.bf16.mxu0 0
        %2318 = vmatpush1.bf16.msra.mxu0 0
        %2319 = vmatprep.subr.bf16.mxu0 0
        %2320 = vmatpush1.bf16.msra.mxu0 0
        %2321 = vmatprep.subr.bf16.mxu0 0
        %2322 = vmatpush1.bf16.msra.mxu0 0
        %2323 = vmatprep.mubr.bf16.mxu0 0
        %2324 = vmatmul.mubr.bf16.gmra.mrb[0].mxu0 %v2286
        %v2325 = vpop.f32.mrb[0].mxu0
        %v2326 = vadd.f32 0.0, %v2325
        %v2327 = vpop.f32.mrb[0].mxu0
        %v2328 = vpop.f32.mrb[0].mxu0
        %v2329 = vpop.f32.mrb[0].mxu0
        %2330 = vdwg.mxu0
        %v2331 = vmax.f32 %v2326, 0.0
        %v2332 = vpack.c.bf16 %v2331, %v2331
        %s2333 = scalar_lea.vmem %s155, 620 [#allocation5]
        %v2334 = vld [vmem:[%s2333] sm:$0xf]
        %v2335 = vld [vmem:[%s2333 + $0x4] sm:$0xf]
        %v2336 = vld [vmem:[%s2333 + $0x8] sm:$0xf]
        %v2337 = vld [vmem:[%s2333 + $0xc] sm:$0xf]
        %v2338 = vld [vmem:[%s2333 + $0x10] sm:$0xf]
        %v2344 = vunpack.c.l.b16 %v2334
        %v2345 = vunpack.c.l.b16 %v2335
        %v2346 = vunpack.c.l.b16 %v2336
        %v2347 = vunpack.c.l.b16 %v2337
        %v2348 = vunpack.c.l.b16 %v2338
        %v2349 = vpack.c.b16 %v2345, %v2344
        %v2350 = vpack.c.b16 %v2347, %v2346
        %v2351 = vpack.c.b16 %v2348, %v2348
        %v2355 = vsel %vm200, %v2332, 0
        %v2358 = vsel %vm204, %v2351, 0
        %2360 = vmatprep.subr.bf16.mxu0 0
        %2361 = vmatpush1.bf16.msra.mxu0 %v2349
        %2362 = vmatprep.subr.bf16.mxu0 0
        %2363 = vmatpush1.bf16.msra.mxu0 %v2350
        %2364 = vmatprep.subr.bf16.mxu0 0
        %2365 = vmatpush1.bf16.msra.mxu0 %v2358
        %2366 = vmatprep.subr.bf16.mxu0 0
        %2367 = vmatpush1.bf16.msra.mxu0 0
        %2368 = vmatprep.subr.bf16.mxu0 0
        %2369 = vmatpush1.bf16.msra.mxu0 0
        %2370 = vmatprep.subr.bf16.mxu0 0
        %2371 = vmatpush1.bf16.msra.mxu0 0
        %2372 = vmatprep.subr.bf16.mxu0 0
        %2373 = vmatpush1.bf16.msra.mxu0 0
        %2374 = vmatprep.subr.bf16.mxu0 0
        %2375 = vmatpush1.bf16.msra.mxu0 0
        %2376 = vmatprep.subr.bf16.mxu0 0
        %2377 = vmatpush1.bf16.msra.mxu0 0
        %2378 = vmatprep.subr.bf16.mxu0 0
        %2379 = vmatpush1.bf16.msra.mxu0 0
        %2380 = vmatprep.subr.bf16.mxu0 0
        %2381 = vmatpush1.bf16.msra.mxu0 0
        %2382 = vmatprep.subr.bf16.mxu0 0
        %2383 = vmatpush1.bf16.msra.mxu0 0
        %2384 = vmatprep.subr.bf16.mxu0 0
        %2385 = vmatpush1.bf16.msra.mxu0 0
        %2386 = vmatprep.subr.bf16.mxu0 0
        %2387 = vmatpush1.bf16.msra.mxu0 0
        %2388 = vmatprep.subr.bf16.mxu0 0
        %2389 = vmatpush1.bf16.msra.mxu0 0
        %2390 = vmatprep.subr.bf16.mxu0 0
        %2391 = vmatpush1.bf16.msra.mxu0 0
        %2392 = vmatprep.mubr.bf16.mxu0 0
        %2393 = vmatmul.mubr.bf16.gmra.mrb[0].mxu0 %v2355
        %v2394 = vpop.f32.mrb[0].mxu0
        %v2395 = vadd.f32 0.0, %v2394
        %v2396 = vpop.f32.mrb[0].mxu0
        %v2397 = vpop.f32.mrb[0].mxu0
        %v2398 = vpop.f32.mrb[0].mxu0
        %2399 = vdwg.mxu0
        %v2400 = vsub.f32 0.0, %v2395
        %v2401 = vmul.f32 %v2400, 1.442695
        %v2402 = vpow.pop %v2401
        %v2403 = vadd.f32 %v2402, 1.0
        %v2404 = vrcp.pop %v2403
        %s2405 = scalar_lea.vmem %s175, 56 [#allocation7]
        %2406 = vst [vmem:[%s2405] sm:$0xff] %v2404
        %s2407 = sand.u32 %s75, 1
        %s2408 = scalar_lea.sflag [#allocation4], %s2407
        %s2409 = sand.u32 %s75, 1
        %s2410 = smul.addr %s2409, 64
        %s2411 = scalar_lea.vmem [#allocation7], %s2410
        // Predicated region
        $region37: #{tpu_custom_call.1} parent=27 // pred_check
          %p2412 = pneg %p85
        $region38: #{tpu_custom_call.1} parent=27 // pred_check_branch
          %2414 = sbr.rel (%p2412) target = $region40
        $region39: #{tpu_custom_call.1} parent=27 // pred_region
          %s2415 = smul.u32 8, %s20
          %s2417 = ssub.s32 1024, 1024
          %2418 = vsyncadd %s2408, %s2417
          %s2419 = smul.addr %s2415, 128
          %s2420 = scalar_lea.hbm %s2, %s2419
          %s2421 = sshll.u32 %s2411, 4
          %s2422 = int_to_ptr.vmem [resolvable:$true] %s2421
          %2427 = dma.vmem_to_hbm [thread:$0]  %s2422, 1024, %s2420, %s2408, 128, 128, 8
        $region40: #{tpu_custom_call.1} parent=27 // pred_fallthru
          _
      $region28: #{tpu_custom_call.1} parent=5 // pred_fallthru
        _
      %p2428 = scmp.le.s32.totalorder 2, %s15
      // Predicated region
      $region41: #{tpu_custom_call.1} parent=5 // pred_check
        %p2429 = pneg %p2428
      $region42: #{tpu_custom_call.1} parent=5 // pred_check_branch
        %2431 = sbr.rel (%p2429) target = $region44
      $region43: #{tpu_custom_call.1} parent=5 // pred_region
        %s2432 = ssub.s32 %s15, 2
        // Predicated region
        $region45: #{tpu_custom_call.1} parent=43 // pred_check
          %p2433 = pneg %p91
        $region46: #{tpu_custom_call.1} parent=43 // pred_check_branch
          %2435 = sbr.rel (%p2433) target = $region48
        $region47: #{tpu_custom_call.1} parent=43 // pred_region
          %s2436 = sand.u32 %s76, 1
          %s2437 = scalar_lea.sflag [#allocation4], %s2436
          %s2438 = sand.u32 %s76, 1
          %s2439 = smul.addr %s2438, 64
          %s2440 = scalar_lea.vmem [#allocation7], %s2439
          %2441 = dma.done %s2437, 1024
        $region48: #{tpu_custom_call.1} parent=43 // pred_fallthru
          _
      $region44: #{tpu_custom_call.1} parent=5 // pred_fallthru
        _
    $region6: #{tpu_custom_call.1} parent=1 // loop_footer
      %s19 = sadd.s32 1, %s15
    $region7: #{tpu_custom_call.1} parent=1 // loop_footer_branch
      %14 = sbr.rel target = $region3
    $region8: #{tpu_custom_call.1} parent=1 // loop_exit
      _
    %2442 = vsyncpa [#allocation3], 1
    %s2443 = scalar_lea.sflag [#allocation3], 1
    %2444 = vsyncpa %s2443, 1
    %2445 = vsyncpa [#allocation6], 1
    %s2446 = scalar_lea.sflag [#allocation6], 1
    %2447 = vsyncpa %s2446, 1
    %2448 = vsyncpa [#allocation4], 1
    %s2449 = scalar_lea.sflag [#allocation4], 1
    %2450 = vsyncpa %s2449, 1

</llo_original>
